<compile_context>
chip_gen: v7x
topology: tpu7x:2x2x1
jax: 0.10.0
libtpu: 0.0.40
codegen_flags: <defaults>
</compile_context>

<pallas_src>
import functools

import jax
import jax.numpy as jnp
from jax.experimental import pallas as pl
from jax.experimental.pallas import tpu as pltpu

NN_EMB = 128
MF_EMB = 32
H1, H2, H3 = 512, 256, 32
OUT = 5
OUT_PAD = 8  # padded output width; columns 5..7 are zeros


def _round_up(x, m):
    return (x + m - 1) // m * m


def _neumf_kernel(nn_u_ref, nn_i_ref, score_ref, mf_u_ref, mf_i_ref,
                  w1_ref, w1s_ref, b1_ref,
                  w2_ref, b2_ref,
                  w3_ref, b3_ref,
                  wn_mf_ref, wn_x_ref, bn_ref,
                  out_ref, *, split_fc1):
    cd = w1_ref.dtype                                 # compute (weight) dtype, bf16
    score = score_ref[...]                            # (tb, 1) f32

    # fc1 over the concat [nn_user || nn_item]; the scalar `score` column of
    # the 257-wide fc1 input is applied as a rank-1 broadcast (identical math
    # to the concatenated matmul).
    if split_fc1:
        # v5e-friendly: two accumulated K=128 dots, no (tb, 256) concat copy.
        h = jnp.dot(nn_u_ref[...], w1_ref[:NN_EMB, :],
                    preferred_element_type=jnp.float32)
        h = h + jnp.dot(nn_i_ref[...], w1_ref[NN_EMB:, :],
                        preferred_element_type=jnp.float32)
    else:
        # v6e/v7x: one fused K=256 dot fills the 256-deep MXU; concat is bf16.
        x = jnp.concatenate([nn_u_ref[...], nn_i_ref[...]], axis=-1)  # (tb,256) bf16
        h = jnp.dot(x, w1_ref[...], preferred_element_type=jnp.float32)
    h = h + score * w1s_ref[...] + b1_ref[...]
    h = jnp.maximum(h, 0.0)
    # dropout -> identity (eval mode)

    # fc2 + ReLU
    h = jnp.dot(h.astype(cd), w2_ref[...],
                preferred_element_type=jnp.float32) + b2_ref[...]
    h = jnp.maximum(h, 0.0)

    # fc3 + ReLU
    h = jnp.dot(h.astype(cd), w3_ref[...],
                preferred_element_type=jnp.float32) + b3_ref[...]
    h = jnp.maximum(h, 0.0)

    # GMF branch: elementwise user*item*score (kept in bf16 before the dot)
    mf_x = (mf_u_ref[...] * mf_i_ref[...]) * score.astype(cd)       # (tb, 32)

    # neumf linear over (implicit) concat [mf_x, h]; output padded to 8 lanes
    out = (jnp.dot(mf_x, wn_mf_ref[...], preferred_element_type=jnp.float32)
           + jnp.dot(h.astype(cd), wn_x_ref[...], preferred_element_type=jnp.float32)
           + bn_ref[...])
    out_ref[...] = out.astype(out_ref.dtype)


def neumf_pallas(nn_u, nn_i, score, mf_u, mf_i, params, *,
                 tb=1024, split_fc1=False):
    """Fused MLP + GMF + final linear, tiled over batch (no wrapper padding)."""
    B = nn_u.shape[0]
    # Big tile for MXU utilization, clamped for tiny demos.
    tb = max(8, min(tb, _round_up(B, 8)))
    # Prefer >= 2 grid steps so the "parallel" batch axis can shard across
    # both TensorCores on v7x (no-op on single-TC v5e/v6e).
    if pl.cdiv(B, tb) < 2 and tb > 8:
        tb = max(8, _round_up(pl.cdiv(B, 2), 8))
    grid = (pl.cdiv(B, tb),)

    def batch_spec(f):
        return pl.BlockSpec((tb, f), lambda i: (i, 0))

    def full_spec(shape):
        # Constant index map; second buffer of the auto double-buffering is
        # dead VMEM but harmless at this footprint.
        # TODO(synk): pipeline_mode=pl.Buffered(1) once single-buffering of
        # constant-index specs is verified on the target jax version.
        return pl.BlockSpec(shape, lambda i: (0,) * len(shape))

    in_specs = [
        batch_spec(NN_EMB),                  # nn_u (bf16)
        batch_spec(NN_EMB),                  # nn_i (bf16)
        batch_spec(1),                       # score (f32)
        batch_spec(MF_EMB),                  # mf_u (bf16)
        batch_spec(MF_EMB),                  # mf_i (bf16)
        full_spec((2 * NN_EMB, H1)),         # w1_ui (fused user||item weight)
        full_spec((1, H1)),                  # w1s   (score column of fc1, f32)
        full_spec((1, H1)),                  # b1
        full_spec((H1, H2)),                 # w2
        full_spec((1, H2)),                  # b2
        full_spec((H2, H3)),                 # w3
        full_spec((1, H3)),                  # b3
        full_spec((MF_EMB, OUT_PAD)),        # wn_mf (padded to 8 cols)
        full_spec((H3, OUT_PAD)),            # wn_x  (padded to 8 cols)
        full_spec((1, OUT_PAD)),             # bn    (padded to 8 cols)
    ]
    out_spec = pl.BlockSpec((tb, OUT_PAD), lambda i: (i, 0))

    wbytes = jnp.dtype(params["w1_ui"].dtype).itemsize
    ebytes = jnp.dtype(nn_u.dtype).itemsize
    matmul_elems = (2 * NN_EMB * H1 + H1 * H2 + H2 * H3
                    + (MF_EMB + H3) * OUT_PAD)
    cost = pl.CostEstimate(
        flops=2 * B * matmul_elems,
        transcendentals=0,
        bytes_accessed=(B * (ebytes * (2 * NN_EMB + 2 * MF_EMB) + 4
                             + 4 * OUT_PAD)
                        + matmul_elems * wbytes
                        + 4 * (2 * H1 + H2 + H3 + OUT_PAD)),
    )

    fn = pl.pallas_call(
        functools.partial(_neumf_kernel, split_fc1=split_fc1),
        out_shape=jax.ShapeDtypeStruct((B, OUT_PAD), jnp.float32),
        grid_spec=pltpu.PrefetchScalarGridSpec(
            num_scalar_prefetch=0,
            grid=grid,
            in_specs=in_specs,
            out_specs=out_spec,
        ),
        compiler_params=pltpu.CompilerParams(
            dimension_semantics=("parallel",)),
        cost_estimate=cost,
    )
    out = fn(nn_u, nn_i, score, mf_u, mf_i,
             params["w1_ui"], params["w1s"], params["b1"],
             params["w2"], params["b2"],
             params["w3"], params["b3"],
             params["wn_mf"], params["wn_x"], params["bn"])
    return out[:, :OUT]


def init_params(key, num_users, num_items, param_dtype=jnp.bfloat16,
                emb_dtype=jnp.bfloat16):
    """Deterministic parameter init mirroring the PyTorch module's shapes."""
    ks = jax.random.split(key, 12)

    def lin(kw, kb, fan_in, fan_out):
        bound = 1.0 / jnp.sqrt(fan_in)
        w = jax.random.uniform(kw, (fan_in, fan_out), jnp.float32, -bound, bound)
        b = jax.random.uniform(kb, (1, fan_out), jnp.float32, -bound, bound)
        return w, b

    # fc1 weight for input dim 2*128+1 = 257, split into [user||item] + score.
    w1_full, b1 = lin(ks[0], ks[1], 2 * NN_EMB + 1, H1)
    w2, b2 = lin(ks[2], ks[3], H1, H2)
    w3, b3 = lin(ks[4], ks[5], H2, H3)
    wn_full, bn = lin(ks[6], ks[7], MF_EMB + H3, OUT)

    def pad_out(w):  # (rows, 5) -> (rows, 8) with zero columns
        return jnp.pad(w, ((0, 0), (0, OUT_PAD - OUT)))

    params = {
        # embedding tables, N(0,1) like nn.Embedding default, stored bf16
        "mf_usr_emb": jax.random.normal(ks[8], (num_users, MF_EMB), jnp.float32).astype(emb_dtype),
        "mf_item_emb": jax.random.normal(ks[9], (num_items, MF_EMB), jnp.float32).astype(emb_dtype),
        "nn_usr_emb": jax.random.normal(ks[10], (num_users, NN_EMB), jnp.float32).astype(emb_dtype),
        "nn_item_emb": jax.random.normal(ks[11], (num_items, NN_EMB), jnp.float32).astype(emb_dtype),
        # fc1: rows [0:256] -> [nn_user || nn_item] (bf16), row [256] -> score (f32)
        "w1_ui": w1_full[:2 * NN_EMB].astype(param_dtype),
        "w1s": w1_full[2 * NN_EMB:],
        "b1": b1,
        "w2": w2.astype(param_dtype), "b2": b2,
        "w3": w3.astype(param_dtype), "b3": b3,
        # neumf split + zero-padding of the 5 outputs to 8 columns
        "wn_mf": pad_out(wn_full[:MF_EMB]).astype(param_dtype),
        "wn_x": pad_out(wn_full[MF_EMB:]).astype(param_dtype),
        "bn": pad_out(bn),
    }
    return params


def rtpred_forward(user, item, score, params, *, tb=1024, split_fc1=False):
    """Full forward.  Embedding gathers are glue (plain JAX); the rest is the
    fused Pallas kernel."""
    nn_u = params["nn_usr_emb"][user]      # (B, 128) bf16
    nn_i = params["nn_item_emb"][item]     # (B, 128) bf16
    mf_u = params["mf_usr_emb"][user]      # (B, 32)  bf16
    mf_i = params["mf_item_emb"][item]     # (B, 32)  bf16
    out = neumf_pallas(nn_u, nn_i, score, mf_u, mf_i, params,
                       tb=tb, split_fc1=split_fc1)
    return jnp.squeeze(out)                # matches torch .squeeze()


def rtpred_reference(user, item, score, params):
    """Pure-JAX reference (same bf16 weights / f32 accumulation) for checking."""
    cd = params["w1_ui"].dtype
    nn_u = params["nn_usr_emb"][user]
    nn_i = params["nn_item_emb"][item]
    mf_u = params["mf_usr_emb"][user]
    mf_i = params["mf_item_emb"][item]

    x = jnp.concatenate([nn_u, nn_i], axis=-1)
    h = jnp.dot(x, params["w1_ui"], preferred_element_type=jnp.float32)
    h = jnp.maximum(h + score * params["w1s"] + params["b1"], 0.0)
    h = jnp.maximum(jnp.dot(h.astype(cd), params["w2"],
                            preferred_element_type=jnp.float32) + params["b2"], 0.0)
    h = jnp.maximum(jnp.dot(h.astype(cd), params["w3"],
                            preferred_element_type=jnp.float32) + params["b3"], 0.0)
    mf_x = (mf_u * mf_i) * score.astype(cd)
    out = (jnp.dot(mf_x, params["wn_mf"], preferred_element_type=jnp.float32)
           + jnp.dot(h.astype(cd), params["wn_x"], preferred_element_type=jnp.float32)
           + params["bn"])
    return jnp.squeeze(out[:, :OUT])


if __name__ == "__main__":
    num_users, num_items = 64, 48
    B = 8

    key = jax.random.PRNGKey(0)
    k_user, k_item, k_score, k_params = jax.random.split(key, 4)

    params = init_params(k_params, num_users, num_items)
    user = jax.random.randint(k_user, (B,), 0, num_users, dtype=jnp.int32)
    item = jax.random.randint(k_item, (B,), 0, num_items, dtype=jnp.int32)
    score = jax.random.uniform(k_score, (B, 1), jnp.float32)

    out = jax.block_until_ready(rtpred_forward(user, item, score, params))
    ref = jax.block_until_ready(rtpred_reference(user, item, score, params))

    assert out.shape == (B, OUT), out.shape
    assert jnp.allclose(out, ref, atol=2e-2, rtol=2e-2), (
        f"max abs err {jnp.max(jnp.abs(out - ref))}")
    print("KERNEL_OK")
</pallas_src>

<mosaic_0001>
module attributes {stable_mosaic.version = 11 : i64} {
  func.func @_neumf_kernel(%arg0: i32, %arg1: memref<8x128xbf16, #tpu.memory_space<vmem>>, %arg2: memref<8x128xbf16, #tpu.memory_space<vmem>>, %arg3: memref<8x1xf32, #tpu.memory_space<vmem>>, %arg4: memref<8x32xbf16, #tpu.memory_space<vmem>>, %arg5: memref<8x32xbf16, #tpu.memory_space<vmem>>, %arg6: memref<256x512xbf16, #tpu.memory_space<vmem>>, %arg7: memref<1x512xf32, #tpu.memory_space<vmem>>, %arg8: memref<1x512xf32, #tpu.memory_space<vmem>>, %arg9: memref<512x256xbf16, #tpu.memory_space<vmem>>, %arg10: memref<1x256xf32, #tpu.memory_space<vmem>>, %arg11: memref<256x32xbf16, #tpu.memory_space<vmem>>, %arg12: memref<1x32xf32, #tpu.memory_space<vmem>>, %arg13: memref<32x8xbf16, #tpu.memory_space<vmem>>, %arg14: memref<32x8xbf16, #tpu.memory_space<vmem>>, %arg15: memref<1x8xf32, #tpu.memory_space<vmem>>, %arg16: memref<8x8xf32, #tpu.memory_space<vmem>>) attributes {dimension_semantics = [#tpu.dimension_semantics<parallel>], iteration_bounds = array<i64: 1>, scalar_prefetch = 0 : i64, scratch_operands = 0 : i64, tpu.core_type = #tpu.core_type<tc>, window_params = [{transform_indices = @transform_0, window_bounds = array<i64: 8, 128>}, {transform_indices = @transform_1, window_bounds = array<i64: 8, 128>}, {transform_indices = @transform_2, window_bounds = array<i64: 8, 1>}, {transform_indices = @transform_3, window_bounds = array<i64: 8, 32>}, {transform_indices = @transform_4, window_bounds = array<i64: 8, 32>}, {pipeline_mode = #tpu.pipeline_mode<synchronous>, transform_indices = @transform_5, window_bounds = array<i64: 256, 512>}, {pipeline_mode = #tpu.pipeline_mode<synchronous>, transform_indices = @transform_6, window_bounds = array<i64: 1, 512>}, {pipeline_mode = #tpu.pipeline_mode<synchronous>, transform_indices = @transform_7, window_bounds = array<i64: 1, 512>}, {pipeline_mode = #tpu.pipeline_mode<synchronous>, transform_indices = @transform_8, window_bounds = array<i64: 512, 256>}, {pipeline_mode = #tpu.pipeline_mode<synchronous>, transform_indices = @transform_9, window_bounds = array<i64: 1, 256>}, {pipeline_mode = #tpu.pipeline_mode<synchronous>, transform_indices = @transform_10, window_bounds = array<i64: 256, 32>}, {pipeline_mode = #tpu.pipeline_mode<synchronous>, transform_indices = @transform_11, window_bounds = array<i64: 1, 32>}, {pipeline_mode = #tpu.pipeline_mode<synchronous>, transform_indices = @transform_12, window_bounds = array<i64: 32, 8>}, {pipeline_mode = #tpu.pipeline_mode<synchronous>, transform_indices = @transform_13, window_bounds = array<i64: 32, 8>}, {pipeline_mode = #tpu.pipeline_mode<synchronous>, transform_indices = @transform_14, window_bounds = array<i64: 1, 8>}, {transform_indices = @transform_15, window_bounds = array<i64: 8, 8>}]} {
    %c0 = arith.constant 0 : index
    %c0_0 = arith.constant 0 : index
    %0 = vector.load %arg3[%c0, %c0_0] : memref<8x1xf32, #tpu.memory_space<vmem>>, vector<8x1xf32>
    %c0_1 = arith.constant 0 : index
    %c0_2 = arith.constant 0 : index
    %1 = vector.load %arg1[%c0_1, %c0_2] : memref<8x128xbf16, #tpu.memory_space<vmem>>, vector<8x128xbf16>
    %c0_3 = arith.constant 0 : index
    %c0_4 = arith.constant 0 : index
    %2 = vector.load %arg2[%c0_3, %c0_4] : memref<8x128xbf16, #tpu.memory_space<vmem>>, vector<8x128xbf16>
    %3 = tpu.concatenate %1, %2 in 1 : vector<8x128xbf16>, vector<8x128xbf16> -> vector<8x256xbf16>
    %c0_5 = arith.constant 0 : index
    %c0_6 = arith.constant 0 : index
    %4 = vector.load %arg6[%c0_5, %c0_6] : memref<256x512xbf16, #tpu.memory_space<vmem>>, vector<256x512xbf16>
    %cst = arith.constant dense<0.000000e+00> : vector<8x512xf32>
    %5 = tpu.matmul %3, %4, %cst {dimension_numbers = #tpu.dot_dimension_numbers<[1], [0], [0], [1], [0, 0, 1, 1], [], []>} : vector<8x256xbf16>, vector<256x512xbf16>, vector<8x512xf32> -> vector<8x512xf32>
    %c0_7 = arith.constant 0 : index
    %c0_8 = arith.constant 0 : index
    %6 = vector.load %arg7[%c0_7, %c0_8] : memref<1x512xf32, #tpu.memory_space<vmem>>, vector<1x512xf32>
    %7 = vector.broadcast %0 : vector<8x1xf32> to vector<8x512xf32>
    %8 = vector.broadcast %6 : vector<1x512xf32> to vector<8x512xf32>
    %9 = arith.mulf %7, %8 : vector<8x512xf32>
    %10 = arith.addf %5, %9 : vector<8x512xf32>
    %c0_9 = arith.constant 0 : index
    %c0_10 = arith.constant 0 : index
    %11 = vector.load %arg8[%c0_9, %c0_10] : memref<1x512xf32, #tpu.memory_space<vmem>>, vector<1x512xf32>
    %12 = vector.broadcast %11 : vector<1x512xf32> to vector<8x512xf32>
    %13 = arith.addf %10, %12 : vector<8x512xf32>
    %cst_11 = arith.constant 0.000000e+00 : f32
    %14 = vector.broadcast %cst_11 : f32 to vector<8x512xf32>
    %15 = arith.maximumf %13, %14 : vector<8x512xf32>
    %16 = arith.truncf %15 : vector<8x512xf32> to vector<8x512xbf16>
    %c0_12 = arith.constant 0 : index
    %c0_13 = arith.constant 0 : index
    %17 = vector.load %arg9[%c0_12, %c0_13] : memref<512x256xbf16, #tpu.memory_space<vmem>>, vector<512x256xbf16>
    %cst_14 = arith.constant dense<0.000000e+00> : vector<8x256xf32>
    %18 = tpu.matmul %16, %17, %cst_14 {dimension_numbers = #tpu.dot_dimension_numbers<[1], [0], [0], [1], [0, 0, 1, 1], [], []>} : vector<8x512xbf16>, vector<512x256xbf16>, vector<8x256xf32> -> vector<8x256xf32>
    %c0_15 = arith.constant 0 : index
    %c0_16 = arith.constant 0 : index
    %19 = vector.load %arg10[%c0_15, %c0_16] : memref<1x256xf32, #tpu.memory_space<vmem>>, vector<1x256xf32>
    %20 = vector.broadcast %19 : vector<1x256xf32> to vector<8x256xf32>
    %21 = arith.addf %18, %20 : vector<8x256xf32>
    %cst_17 = arith.constant 0.000000e+00 : f32
    %22 = vector.broadcast %cst_17 : f32 to vector<8x256xf32>
    %23 = arith.maximumf %21, %22 : vector<8x256xf32>
    %24 = arith.truncf %23 : vector<8x256xf32> to vector<8x256xbf16>
    %c0_18 = arith.constant 0 : index
    %c0_19 = arith.constant 0 : index
    %25 = vector.load %arg11[%c0_18, %c0_19] : memref<256x32xbf16, #tpu.memory_space<vmem>>, vector<256x32xbf16>
    %cst_20 = arith.constant dense<0.000000e+00> : vector<8x32xf32>
    %26 = tpu.matmul %24, %25, %cst_20 {dimension_numbers = #tpu.dot_dimension_numbers<[1], [0], [0], [1], [0, 0, 1, 1], [], []>} : vector<8x256xbf16>, vector<256x32xbf16>, vector<8x32xf32> -> vector<8x32xf32>
    %c0_21 = arith.constant 0 : index
    %c0_22 = arith.constant 0 : index
    %27 = vector.load %arg12[%c0_21, %c0_22] : memref<1x32xf32, #tpu.memory_space<vmem>>, vector<1x32xf32>
    %28 = vector.broadcast %27 : vector<1x32xf32> to vector<8x32xf32>
    %29 = arith.addf %26, %28 : vector<8x32xf32>
    %cst_23 = arith.constant 0.000000e+00 : f32
    %30 = vector.broadcast %cst_23 : f32 to vector<8x32xf32>
    %31 = arith.maximumf %29, %30 : vector<8x32xf32>
    %c0_24 = arith.constant 0 : index
    %c0_25 = arith.constant 0 : index
    %32 = vector.load %arg4[%c0_24, %c0_25] : memref<8x32xbf16, #tpu.memory_space<vmem>>, vector<8x32xbf16>
    %c0_26 = arith.constant 0 : index
    %c0_27 = arith.constant 0 : index
    %33 = vector.load %arg5[%c0_26, %c0_27] : memref<8x32xbf16, #tpu.memory_space<vmem>>, vector<8x32xbf16>
    %34 = arith.mulf %32, %33 : vector<8x32xbf16>
    %35 = arith.truncf %0 : vector<8x1xf32> to vector<8x1xbf16>
    %36 = vector.broadcast %35 : vector<8x1xbf16> to vector<8x32xbf16>
    %37 = arith.mulf %34, %36 : vector<8x32xbf16>
    %c0_28 = arith.constant 0 : index
    %c0_29 = arith.constant 0 : index
    %38 = vector.load %arg13[%c0_28, %c0_29] : memref<32x8xbf16, #tpu.memory_space<vmem>>, vector<32x8xbf16>
    %cst_30 = arith.constant dense<0.000000e+00> : vector<8x8xf32>
    %39 = tpu.matmul %37, %38, %cst_30 {dimension_numbers = #tpu.dot_dimension_numbers<[1], [0], [0], [1], [0, 0, 1, 1], [], []>} : vector<8x32xbf16>, vector<32x8xbf16>, vector<8x8xf32> -> vector<8x8xf32>
    %40 = arith.truncf %31 : vector<8x32xf32> to vector<8x32xbf16>
    %c0_31 = arith.constant 0 : index
    %c0_32 = arith.constant 0 : index
    %41 = vector.load %arg14[%c0_31, %c0_32] : memref<32x8xbf16, #tpu.memory_space<vmem>>, vector<32x8xbf16>
    %cst_33 = arith.constant dense<0.000000e+00> : vector<8x8xf32>
    %42 = tpu.matmul %40, %41, %cst_33 {dimension_numbers = #tpu.dot_dimension_numbers<[1], [0], [0], [1], [0, 0, 1, 1], [], []>} : vector<8x32xbf16>, vector<32x8xbf16>, vector<8x8xf32> -> vector<8x8xf32>
    %43 = arith.addf %39, %42 : vector<8x8xf32>
    %c0_34 = arith.constant 0 : index
    %c0_35 = arith.constant 0 : index
    %44 = vector.load %arg15[%c0_34, %c0_35] : memref<1x8xf32, #tpu.memory_space<vmem>>, vector<1x8xf32>
    %45 = vector.broadcast %44 : vector<1x8xf32> to vector<8x8xf32>
    %46 = arith.addf %43, %45 : vector<8x8xf32>
    %c0_36 = arith.constant 0 : index
    %c0_37 = arith.constant 0 : index
    %47 = vector.load %arg16[%c0_36, %c0_37] : memref<8x8xf32, #tpu.memory_space<vmem>>, vector<8x8xf32>
    tpu.vector_store %arg16[%c0_36, %c0_37], %46 {strides = array<i32>} : memref<8x8xf32, #tpu.memory_space<vmem>>, vector<8x8xf32>,
    return
  }
  func.func @transform_0(%arg0: i32) -> (i32, i32) {
    %c0_i32 = arith.constant 0 : i32
    %c0_i32_0 = arith.constant 0 : i32
    return %arg0, %c0_i32 : i32, i32
  }
  func.func @transform_1(%arg0: i32) -> (i32, i32) {
    %c0_i32 = arith.constant 0 : i32
    %c0_i32_0 = arith.constant 0 : i32
    return %arg0, %c0_i32 : i32, i32
  }
  func.func @transform_2(%arg0: i32) -> (i32, i32) {
    %c0_i32 = arith.constant 0 : i32
    %c0_i32_0 = arith.constant 0 : i32
    return %arg0, %c0_i32 : i32, i32
  }
  func.func @transform_3(%arg0: i32) -> (i32, i32) {
    %c0_i32 = arith.constant 0 : i32
    %c0_i32_0 = arith.constant 0 : i32
    return %arg0, %c0_i32 : i32, i32
  }
  func.func @transform_4(%arg0: i32) -> (i32, i32) {
    %c0_i32 = arith.constant 0 : i32
    %c0_i32_0 = arith.constant 0 : i32
    return %arg0, %c0_i32 : i32, i32
  }
  func.func @transform_5(%arg0: i32) -> (i32, i32) {
    %c0_i32 = arith.constant 0 : i32
    %c0_i32_0 = arith.constant 0 : i32
    %c0_i32_1 = arith.constant 0 : i32
    return %c0_i32, %c0_i32_0 : i32, i32
  }
  func.func @transform_6(%arg0: i32) -> (i32, i32) {
    %c0_i32 = arith.constant 0 : i32
    %c0_i32_0 = arith.constant 0 : i32
    %c0_i32_1 = arith.constant 0 : i32
    return %c0_i32, %c0_i32_0 : i32, i32
  }
  func.func @transform_7(%arg0: i32) -> (i32, i32) {
    %c0_i32 = arith.constant 0 : i32
    %c0_i32_0 = arith.constant 0 : i32
    %c0_i32_1 = arith.constant 0 : i32
    return %c0_i32, %c0_i32_0 : i32, i32
  }
  func.func @transform_8(%arg0: i32) -> (i32, i32) {
    %c0_i32 = arith.constant 0 : i32
    %c0_i32_0 = arith.constant 0 : i32
    %c0_i32_1 = arith.constant 0 : i32
    return %c0_i32, %c0_i32_0 : i32, i32
  }
  func.func @transform_9(%arg0: i32) -> (i32, i32) {
    %c0_i32 = arith.constant 0 : i32
    %c0_i32_0 = arith.constant 0 : i32
    %c0_i32_1 = arith.constant 0 : i32
    return %c0_i32, %c0_i32_0 : i32, i32
  }
  func.func @transform_10(%arg0: i32) -> (i32, i32) {
    %c0_i32 = arith.constant 0 : i32
    %c0_i32_0 = arith.constant 0 : i32
    %c0_i32_1 = arith.constant 0 : i32
    return %c0_i32, %c0_i32_0 : i32, i32
  }
  func.func @transform_11(%arg0: i32) -> (i32, i32) {
    %c0_i32 = arith.constant 0 : i32
    %c0_i32_0 = arith.constant 0 : i32
    %c0_i32_1 = arith.constant 0 : i32
    return %c0_i32, %c0_i32_0 : i32, i32
  }
  func.func @transform_12(%arg0: i32) -> (i32, i32) {
    %c0_i32 = arith.constant 0 : i32
    %c0_i32_0 = arith.constant 0 : i32
    %c0_i32_1 = arith.constant 0 : i32
    return %c0_i32, %c0_i32_0 : i32, i32
  }
  func.func @transform_13(%arg0: i32) -> (i32, i32) {
    %c0_i32 = arith.constant 0 : i32
    %c0_i32_0 = arith.constant 0 : i32
    %c0_i32_1 = arith.constant 0 : i32
    return %c0_i32, %c0_i32_0 : i32, i32
  }
  func.func @transform_14(%arg0: i32) -> (i32, i32) {
    %c0_i32 = arith.constant 0 : i32
    %c0_i32_0 = arith.constant 0 : i32
    %c0_i32_1 = arith.constant 0 : i32
    return %c0_i32, %c0_i32_0 : i32, i32
  }
  func.func @transform_15(%arg0: i32) -> (i32, i32) {
    %c0_i32 = arith.constant 0 : i32
    %c0_i32_0 = arith.constant 0 : i32
    return %arg0, %c0_i32 : i32, i32
  }
}

</mosaic_0001>

<llo_original>
// kernel: tpu_custom_call.1
$region0: #{tpu_custom_call.1}
  #allocation0 [shape = 'u32[]', space=smem, size = 0x4, offset = 0x4, fixed_abs, tag = 'smem constant byte address 0x4 - core index']
  #allocation1 [shape = 'u32[144,128]{1,0:T(1,128)}', space=vmem, size = 0x12000, scoped, tag = 'internal scratch']
  %s0 = inlined_call_operand.vmem [shape: bf16[8,128], index: 0, kind: input, shape index: {}]
  %s1 = inlined_call_operand.vmem [shape: bf16[8,128], index: 1, kind: input, shape index: {}]
  %s2 = inlined_call_operand.vmem [shape: f32[8,1], index: 2, kind: input, shape index: {}]
  %s3 = inlined_call_operand.vmem [shape: bf16[8,32], index: 3, kind: input, shape index: {}]
  %s4 = inlined_call_operand.vmem [shape: bf16[8,32], index: 4, kind: input, shape index: {}]
  %s5 = inlined_call_operand.hbm [shape: bf16[256,512], index: 5, kind: input, shape index: {}]
  %s6 = inlined_call_operand.vmem [shape: f32[1,512], index: 6, kind: input, shape index: {}]
  %s7 = inlined_call_operand.vmem [shape: f32[1,512], index: 7, kind: input, shape index: {}]
  %s8 = inlined_call_operand.hbm [shape: bf16[512,256], index: 8, kind: input, shape index: {}]
  %s9 = inlined_call_operand.vmem [shape: f32[1,256], index: 9, kind: input, shape index: {}]
  %s10 = inlined_call_operand.vmem [shape: bf16[256,32], index: 10, kind: input, shape index: {}]
  %s11 = inlined_call_operand.vmem [shape: f32[1,32], index: 11, kind: input, shape index: {}]
  %s12 = inlined_call_operand.vmem [shape: bf16[32,8], index: 12, kind: input, shape index: {}]
  %s13 = inlined_call_operand.vmem [shape: bf16[32,8], index: 13, kind: input, shape index: {}]
  %s14 = inlined_call_operand.vmem [shape: f32[1,8], index: 14, kind: input, shape index: {}]
  %s15 = inlined_call_operand.hbm [shape: f32[8,8], index: 15, kind: output, shape index: {}]
  %s16 = sld [smem:[#allocation0]]
  $region78: #{tpu_custom_call.1} parent=0
    _
  %s18 = ssub.s32 1, %s16
  %s19 = scalar_select 0, %s18, %s16
  $region1: #{tpu_custom_call.1} parent=0
    #allocation2 [shape = 'u8[262144]{0}', space=vmem, size = 0x40000, scoped, tag = 'input window, operand 5, single buffered']
    #allocation3 [shape = 's32[1]{0}', space=sflag, size = 0x4, scoped, tag = 'scoped memory for tpu_custom_call.1']
    #allocation4 [shape = 's32[1]{0}', space=sflag, size = 0x4, scoped, tag = 'scoped memory for tpu_custom_call.1']
    #allocation5 [shape = 'u8[262144]{0}', space=vmem, size = 0x40000, scoped, tag = 'input window, operand 8, single buffered']
    #allocation6 [shape = 's32[1]{0}', space=sflag, size = 0x4, scoped, tag = 'scoped memory for tpu_custom_call.1']
    #allocation7 [shape = 'u8[4096]{0}', space=vmem, size = 0x1000, scoped, tag = 'output window, operand 0, single buffered']
    %20 = vsyncpa [#allocation3], 0
    %21 = vsyncpa [#allocation6], 0
    %22 = vsyncpa [#allocation4], 0
    // Predicated region
    $region2: #{tpu_custom_call.1} parent=1 // pred_check
      _
    $region3: #{tpu_custom_call.1} parent=1 // pred_check_branch
      %24 = sbr.rel (0) target = $region5
    $region4: #{tpu_custom_call.1} parent=1 // pred_region
      _
    $region5: #{tpu_custom_call.1} parent=1 // pred_fallthru
      _
    // Predicated region
    $region6: #{tpu_custom_call.1} parent=1 // pred_check
      _
    $region7: #{tpu_custom_call.1} parent=1 // pred_check_branch
      %26 = sbr.rel (0) target = $region9
    $region8: #{tpu_custom_call.1} parent=1 // pred_region
      _
    $region9: #{tpu_custom_call.1} parent=1 // pred_fallthru
      _
    // Predicated region
    $region10: #{tpu_custom_call.1} parent=1 // pred_check
      _
    $region11: #{tpu_custom_call.1} parent=1 // pred_check_branch
      %28 = sbr.rel (0) target = $region13
    $region12: #{tpu_custom_call.1} parent=1 // pred_region
      _
    $region13: #{tpu_custom_call.1} parent=1 // pred_fallthru
      _
    // Predicated region
    $region14: #{tpu_custom_call.1} parent=1 // pred_check
      _
    $region15: #{tpu_custom_call.1} parent=1 // pred_check_branch
      %30 = sbr.rel (0) target = $region17
    $region16: #{tpu_custom_call.1} parent=1 // pred_region
      _
    $region17: #{tpu_custom_call.1} parent=1 // pred_fallthru
      _
    // Predicated region
    $region18: #{tpu_custom_call.1} parent=1 // pred_check
      _
    $region19: #{tpu_custom_call.1} parent=1 // pred_check_branch
      %32 = sbr.rel (0) target = $region21
    $region20: #{tpu_custom_call.1} parent=1 // pred_region
      _
    $region21: #{tpu_custom_call.1} parent=1 // pred_fallthru
      _
    // Predicated region
    $region22: #{tpu_custom_call.1} parent=1 // pred_check
      _
    $region23: #{tpu_custom_call.1} parent=1 // pred_check_branch
      %34 = sbr.rel (0) target = $region25
    $region24: #{tpu_custom_call.1} parent=1 // pred_region
      %s36 = ssub.s32 8192, 8192
      %37 = vsyncadd [#allocation3], %s36
      %s38 = sshll.u32 [#allocation2], 4
      %s39 = int_to_ptr.vmem [resolvable:$true] %s38
      %44 = dma.hbm_to_vmem [thread:$0]  %s5, 8192, %s39, [#allocation3], 256, 256, 16
    $region25: #{tpu_custom_call.1} parent=1 // pred_fallthru
      _
    // Predicated region
    $region26: #{tpu_custom_call.1} parent=1 // pred_check
      _
    $region27: #{tpu_custom_call.1} parent=1 // pred_check_branch
      %46 = sbr.rel (0) target = $region29
    $region28: #{tpu_custom_call.1} parent=1 // pred_region
      _
    $region29: #{tpu_custom_call.1} parent=1 // pred_fallthru
      _
    // Predicated region
    $region30: #{tpu_custom_call.1} parent=1 // pred_check
      _
    $region31: #{tpu_custom_call.1} parent=1 // pred_check_branch
      %48 = sbr.rel (0) target = $region33
    $region32: #{tpu_custom_call.1} parent=1 // pred_region
      _
    $region33: #{tpu_custom_call.1} parent=1 // pred_fallthru
      _
    // Predicated region
    $region34: #{tpu_custom_call.1} parent=1 // pred_check
      _
    $region35: #{tpu_custom_call.1} parent=1 // pred_check_branch
      %50 = sbr.rel (0) target = $region37
    $region36: #{tpu_custom_call.1} parent=1 // pred_region
      %s52 = ssub.s32 8192, 8192
      %53 = vsyncadd [#allocation6], %s52
      %s54 = sshll.u32 [#allocation5], 4
      %s55 = int_to_ptr.vmem [resolvable:$true] %s54
      %60 = dma.hbm_to_vmem [thread:$0]  %s8, 8192, %s55, [#allocation6], 128, 128, 8
    $region37: #{tpu_custom_call.1} parent=1 // pred_fallthru
      _
    // Predicated region
    $region38: #{tpu_custom_call.1} parent=1 // pred_check
      _
    $region39: #{tpu_custom_call.1} parent=1 // pred_check_branch
      %62 = sbr.rel (0) target = $region41
    $region40: #{tpu_custom_call.1} parent=1 // pred_region
      _
    $region41: #{tpu_custom_call.1} parent=1 // pred_fallthru
      _
    // Predicated region
    $region42: #{tpu_custom_call.1} parent=1 // pred_check
      _
    $region43: #{tpu_custom_call.1} parent=1 // pred_check_branch
      %64 = sbr.rel (0) target = $region45
    $region44: #{tpu_custom_call.1} parent=1 // pred_region
      _
    $region45: #{tpu_custom_call.1} parent=1 // pred_fallthru
      _
    // Predicated region
    $region46: #{tpu_custom_call.1} parent=1 // pred_check
      _
    $region47: #{tpu_custom_call.1} parent=1 // pred_check_branch
      %66 = sbr.rel (0) target = $region49
    $region48: #{tpu_custom_call.1} parent=1 // pred_region
      _
    $region49: #{tpu_custom_call.1} parent=1 // pred_fallthru
      _
    // Predicated region
    $region50: #{tpu_custom_call.1} parent=1 // pred_check
      _
    $region51: #{tpu_custom_call.1} parent=1 // pred_check_branch
      %68 = sbr.rel (0) target = $region53
    $region52: #{tpu_custom_call.1} parent=1 // pred_region
      _
    $region53: #{tpu_custom_call.1} parent=1 // pred_fallthru
      _
    // Predicated region
    $region54: #{tpu_custom_call.1} parent=1 // pred_check
      _
    $region55: #{tpu_custom_call.1} parent=1 // pred_check_branch
      %70 = sbr.rel (0) target = $region57
    $region56: #{tpu_custom_call.1} parent=1 // pred_region
      _
    $region57: #{tpu_custom_call.1} parent=1 // pred_fallthru
      _
    // Predicated region
    $region58: #{tpu_custom_call.1} parent=1 // pred_check
      _
    $region59: #{tpu_custom_call.1} parent=1 // pred_check_branch
      %72 = sbr.rel (0) target = $region61
    $region60: #{tpu_custom_call.1} parent=1 // pred_region
      _
    $region61: #{tpu_custom_call.1} parent=1 // pred_fallthru
      _
    // Predicated region
    $region62: #{tpu_custom_call.1} parent=1 // pred_check
      _
    $region63: #{tpu_custom_call.1} parent=1 // pred_check_branch
      %74 = sbr.rel (0) target = $region65
    $region64: #{tpu_custom_call.1} parent=1 // pred_region
      %75 = dma.done [#allocation3], 8192
    $region65: #{tpu_custom_call.1} parent=1 // pred_fallthru
      _
    // Predicated region
    $region66: #{tpu_custom_call.1} parent=1 // pred_check
      _
    $region67: #{tpu_custom_call.1} parent=1 // pred_check_branch
      %77 = sbr.rel (0) target = $region69
    $region68: #{tpu_custom_call.1} parent=1 // pred_region
      %78 = dma.done [#allocation6], 8192
    $region69: #{tpu_custom_call.1} parent=1 // pred_fallthru
      _
    %v80 = vld [vmem:[%s2] sm:$0xff]
    %v81 = vld [vmem:[%s0] sm:$0xf]
    %v82 = vld [vmem:[%s1] sm:$0xf]
    %v83 = vld [vmem:[#allocation2] sm:$0xff]
    %v84 = vld [vmem:[#allocation2 + $0x8] sm:$0xff]
    %v85 = vld [vmem:[#allocation2 + $0x10] sm:$0xff]
    %v86 = vld [vmem:[#allocation2 + $0x18] sm:$0xff]
    %v87 = vld [vmem:[#allocation2 + $0x20] sm:$0xff]
    %v88 = vld [vmem:[#allocation2 + $0x28] sm:$0xff]
    %v89 = vld [vmem:[#allocation2 + $0x30] sm:$0xff]
    %v90 = vld [vmem:[#allocation2 + $0x38] sm:$0xff]
    %v91 = vld [vmem:[#allocation2 + $0x40] sm:$0xff]
    %v92 = vld [vmem:[#allocation2 + $0x48] sm:$0xff]
    %v93 = vld [vmem:[#allocation2 + $0x50] sm:$0xff]
    %v94 = vld [vmem:[#allocation2 + $0x58] sm:$0xff]
    %v95 = vld [vmem:[#allocation2 + $0x60] sm:$0xff]
    %v96 = vld [vmem:[#allocation2 + $0x68] sm:$0xff]
    %v97 = vld [vmem:[#allocation2 + $0x70] sm:$0xff]
    %v98 = vld [vmem:[#allocation2 + $0x78] sm:$0xff]
    %v99 = vld [vmem:[#allocation2 + $0x80] sm:$0xff]
    %v100 = vld [vmem:[#allocation2 + $0x88] sm:$0xff]
    %v101 = vld [vmem:[#allocation2 + $0x90] sm:$0xff]
    %v102 = vld [vmem:[#allocation2 + $0x98] sm:$0xff]
    %v103 = vld [vmem:[#allocation2 + $0xa0] sm:$0xff]
    %v104 = vld [vmem:[#allocation2 + $0xa8] sm:$0xff]
    %v105 = vld [vmem:[#allocation2 + $0xb0] sm:$0xff]
    %v106 = vld [vmem:[#allocation2 + $0xb8] sm:$0xff]
    %v107 = vld [vmem:[#allocation2 + $0xc0] sm:$0xff]
    %v108 = vld [vmem:[#allocation2 + $0xc8] sm:$0xff]
    %v109 = vld [vmem:[#allocation2 + $0xd0] sm:$0xff]
    %v110 = vld [vmem:[#allocation2 + $0xd8] sm:$0xff]
    %v111 = vld [vmem:[#allocation2 + $0xe0] sm:$0xff]
    %v112 = vld [vmem:[#allocation2 + $0xe8] sm:$0xff]
    %v113 = vld [vmem:[#allocation2 + $0xf0] sm:$0xff]
    %v114 = vld [vmem:[#allocation2 + $0xf8] sm:$0xff]
    %v115 = vld [vmem:[#allocation2 + $0x100] sm:$0xff]
    %v116 = vld [vmem:[#allocation2 + $0x108] sm:$0xff]
    %v117 = vld [vmem:[#allocation2 + $0x110] sm:$0xff]
    %v118 = vld [vmem:[#allocation2 + $0x118] sm:$0xff]
    %v119 = vld [vmem:[#allocation2 + $0x120] sm:$0xff]
    %v120 = vld [vmem:[#allocation2 + $0x128] sm:$0xff]
    %v121 = vld [vmem:[#allocation2 + $0x130] sm:$0xff]
    %v122 = vld [vmem:[#allocation2 + $0x138] sm:$0xff]
    %v123 = vld [vmem:[#allocation2 + $0x140] sm:$0xff]
    %v124 = vld [vmem:[#allocation2 + $0x148] sm:$0xff]
    %v125 = vld [vmem:[#allocation2 + $0x150] sm:$0xff]
    %v126 = vld [vmem:[#allocation2 + $0x158] sm:$0xff]
    %v127 = vld [vmem:[#allocation2 + $0x160] sm:$0xff]
    %v128 = vld [vmem:[#allocation2 + $0x168] sm:$0xff]
    %v129 = vld [vmem:[#allocation2 + $0x170] sm:$0xff]
    %v130 = vld [vmem:[#allocation2 + $0x178] sm:$0xff]
    %v131 = vld [vmem:[#allocation2 + $0x180] sm:$0xff]
    %v132 = vld [vmem:[#allocation2 + $0x188] sm:$0xff]
    %v133 = vld [vmem:[#allocation2 + $0x190] sm:$0xff]
    %v134 = vld [vmem:[#allocation2 + $0x198] sm:$0xff]
    %v135 = vld [vmem:[#allocation2 + $0x1a0] sm:$0xff]
    %v136 = vld [vmem:[#allocation2 + $0x1a8] sm:$0xff]
    %v137 = vld [vmem:[#allocation2 + $0x1b0] sm:$0xff]
    %v138 = vld [vmem:[#allocation2 + $0x1b8] sm:$0xff]
    %v139 = vld [vmem:[#allocation2 + $0x1c0] sm:$0xff]
    %v140 = vld [vmem:[#allocation2 + $0x1c8] sm:$0xff]
    %v141 = vld [vmem:[#allocation2 + $0x1d0] sm:$0xff]
    %v142 = vld [vmem:[#allocation2 + $0x1d8] sm:$0xff]
    %v143 = vld [vmem:[#allocation2 + $0x1e0] sm:$0xff]
    %v144 = vld [vmem:[#allocation2 + $0x1e8] sm:$0xff]
    %v145 = vld [vmem:[#allocation2 + $0x1f0] sm:$0xff]
    %v146 = vld [vmem:[#allocation2 + $0x1f8] sm:$0xff]
    %v147 = vld [vmem:[%s6] sm:$0xf]
    %149 = vset.pattern.permute.xlu0 0
    %150 = vperm.xlu0 %149, %v80
    %v151 = vpop.permute.xlu0 %150
    %v154 = vlaneseq
    %v155 = vshrl.u32 %v154, 7
    %v156 = vsub.s32 0, %v155
    %v157 = vrot.slane %v147, %v156
    %v158 = vlaneseq
    %v159 = vshrl.u32 %v158, 7
    %v160 = vsub.s32 1, %v159
    %v161 = vrot.slane %v147, %v160
    %v162 = vlaneseq
    %v163 = vshrl.u32 %v162, 7
    %v164 = vsub.s32 2, %v163
    %v165 = vrot.slane %v147, %v164
    %v166 = vlaneseq
    %v167 = vshrl.u32 %v166, 7
    %v168 = vsub.s32 3, %v167
    %v169 = vrot.slane %v147, %v168
    %v174 = vmul.f32 %v151, %v157
    %v175 = vmul.f32 %v151, %v161
    %v176 = vmul.f32 %v151, %v165
    %v177 = vmul.f32 %v151, %v169
    %v242 = vunpack.c.l.b16 %v83
    %v243 = vunpack.c.h.b16 %v83
    %v244 = vunpack.c.l.b16 %v84
    %v245 = vunpack.c.h.b16 %v84
    %v246 = vunpack.c.l.b16 %v85
    %v247 = vunpack.c.h.b16 %v85
    %v248 = vunpack.c.l.b16 %v86
    %v249 = vunpack.c.h.b16 %v86
    %v250 = vunpack.c.l.b16 %v87
    %v251 = vunpack.c.h.b16 %v87
    %v252 = vunpack.c.l.b16 %v88
    %v253 = vunpack.c.h.b16 %v88
    %v254 = vunpack.c.l.b16 %v89
    %v255 = vunpack.c.h.b16 %v89
    %v256 = vunpack.c.l.b16 %v90
    %v257 = vunpack.c.h.b16 %v90
    %v258 = vunpack.c.l.b16 %v91
    %v259 = vunpack.c.h.b16 %v91
    %v260 = vunpack.c.l.b16 %v92
    %v261 = vunpack.c.h.b16 %v92
    %v262 = vunpack.c.l.b16 %v93
    %v263 = vunpack.c.h.b16 %v93
    %v264 = vunpack.c.l.b16 %v94
    %v265 = vunpack.c.h.b16 %v94
    %v266 = vunpack.c.l.b16 %v95
    %v267 = vunpack.c.h.b16 %v95
    %v268 = vunpack.c.l.b16 %v96
    %v269 = vunpack.c.h.b16 %v96
    %v270 = vunpack.c.l.b16 %v97
    %v271 = vunpack.c.h.b16 %v97
    %v272 = vunpack.c.l.b16 %v98
    %v273 = vunpack.c.h.b16 %v98
    %v274 = vunpack.c.l.b16 %v99
    %v275 = vunpack.c.h.b16 %v99
    %v276 = vunpack.c.l.b16 %v100
    %v277 = vunpack.c.h.b16 %v100
    %v278 = vunpack.c.l.b16 %v101
    %v279 = vunpack.c.h.b16 %v101
    %v280 = vunpack.c.l.b16 %v102
    %v281 = vunpack.c.h.b16 %v102
    %v282 = vunpack.c.l.b16 %v103
    %v283 = vunpack.c.h.b16 %v103
    %v284 = vunpack.c.l.b16 %v104
    %v285 = vunpack.c.h.b16 %v104
    %v286 = vunpack.c.l.b16 %v105
    %v287 = vunpack.c.h.b16 %v105
    %v288 = vunpack.c.l.b16 %v106
    %v289 = vunpack.c.h.b16 %v106
    %v290 = vunpack.c.l.b16 %v107
    %v291 = vunpack.c.h.b16 %v107
    %v292 = vunpack.c.l.b16 %v108
    %v293 = vunpack.c.h.b16 %v108
    %v294 = vunpack.c.l.b16 %v109
    %v295 = vunpack.c.h.b16 %v109
    %v296 = vunpack.c.l.b16 %v110
    %v297 = vunpack.c.h.b16 %v110
    %v298 = vunpack.c.l.b16 %v111
    %v299 = vunpack.c.h.b16 %v111
    %v300 = vunpack.c.l.b16 %v112
    %v301 = vunpack.c.h.b16 %v112
    %v302 = vunpack.c.l.b16 %v113
    %v303 = vunpack.c.h.b16 %v113
    %v304 = vunpack.c.l.b16 %v114
    %v305 = vunpack.c.h.b16 %v114
    %v306 = vunpack.c.l.b16 %v115
    %v307 = vunpack.c.h.b16 %v115
    %v308 = vunpack.c.l.b16 %v116
    %v309 = vunpack.c.h.b16 %v116
    %v310 = vunpack.c.l.b16 %v117
    %v311 = vunpack.c.h.b16 %v117
    %v312 = vunpack.c.l.b16 %v118
    %v313 = vunpack.c.h.b16 %v118
    %v314 = vunpack.c.l.b16 %v119
    %v315 = vunpack.c.h.b16 %v119
    %v316 = vunpack.c.l.b16 %v120
    %v317 = vunpack.c.h.b16 %v120
    %v318 = vunpack.c.l.b16 %v121
    %v319 = vunpack.c.h.b16 %v121
    %v320 = vunpack.c.l.b16 %v122
    %v321 = vunpack.c.h.b16 %v122
    %v322 = vunpack.c.l.b16 %v123
    %v323 = vunpack.c.h.b16 %v123
    %v324 = vunpack.c.l.b16 %v124
    %v325 = vunpack.c.h.b16 %v124
    %v326 = vunpack.c.l.b16 %v125
    %v327 = vunpack.c.h.b16 %v125
    %v328 = vunpack.c.l.b16 %v126
    %v329 = vunpack.c.h.b16 %v126
    %v330 = vunpack.c.l.b16 %v127
    %v331 = vunpack.c.h.b16 %v127
    %v332 = vunpack.c.l.b16 %v128
    %v333 = vunpack.c.h.b16 %v128
    %v334 = vunpack.c.l.b16 %v129
    %v335 = vunpack.c.h.b16 %v129
    %v336 = vunpack.c.l.b16 %v130
    %v337 = vunpack.c.h.b16 %v130
    %v338 = vunpack.c.l.b16 %v131
    %v339 = vunpack.c.h.b16 %v131
    %v340 = vunpack.c.l.b16 %v132
    %v341 = vunpack.c.h.b16 %v132
    %v342 = vunpack.c.l.b16 %v133
    %v343 = vunpack.c.h.b16 %v133
    %v344 = vunpack.c.l.b16 %v134
    %v345 = vunpack.c.h.b16 %v134
    %v346 = vunpack.c.l.b16 %v135
    %v347 = vunpack.c.h.b16 %v135
    %v348 = vunpack.c.l.b16 %v136
    %v349 = vunpack.c.h.b16 %v136
    %v350 = vunpack.c.l.b16 %v137
    %v351 = vunpack.c.h.b16 %v137
    %v352 = vunpack.c.l.b16 %v138
    %v353 = vunpack.c.h.b16 %v138
    %v354 = vunpack.c.l.b16 %v139
    %v355 = vunpack.c.h.b16 %v139
    %v356 = vunpack.c.l.b16 %v140
    %v357 = vunpack.c.h.b16 %v140
    %v358 = vunpack.c.l.b16 %v141
    %v359 = vunpack.c.h.b16 %v141
    %v360 = vunpack.c.l.b16 %v142
    %v361 = vunpack.c.h.b16 %v142
    %v362 = vunpack.c.l.b16 %v143
    %v363 = vunpack.c.h.b16 %v143
    %v364 = vunpack.c.l.b16 %v144
    %v365 = vunpack.c.h.b16 %v144
    %v366 = vunpack.c.l.b16 %v145
    %v367 = vunpack.c.h.b16 %v145
    %v368 = vunpack.c.l.b16 %v146
    %v369 = vunpack.c.h.b16 %v146
    %v370 = vpack.c.b16 %v246, %v242
    %v371 = vpack.c.b16 %v247, %v243
    %v372 = vpack.c.b16 %v248, %v244
    %v373 = vpack.c.b16 %v249, %v245
    %v374 = vpack.c.b16 %v254, %v250
    %v375 = vpack.c.b16 %v255, %v251
    %v376 = vpack.c.b16 %v256, %v252
    %v377 = vpack.c.b16 %v257, %v253
    %v378 = vpack.c.b16 %v262, %v258
    %v379 = vpack.c.b16 %v263, %v259
    %v380 = vpack.c.b16 %v264, %v260
    %v381 = vpack.c.b16 %v265, %v261
    %v382 = vpack.c.b16 %v270, %v266
    %v383 = vpack.c.b16 %v271, %v267
    %v384 = vpack.c.b16 %v272, %v268
    %v385 = vpack.c.b16 %v273, %v269
    %v386 = vpack.c.b16 %v278, %v274
    %v387 = vpack.c.b16 %v279, %v275
    %v388 = vpack.c.b16 %v280, %v276
    %v389 = vpack.c.b16 %v281, %v277
    %v390 = vpack.c.b16 %v286, %v282
    %v391 = vpack.c.b16 %v287, %v283
    %v392 = vpack.c.b16 %v288, %v284
    %v393 = vpack.c.b16 %v289, %v285
    %v394 = vpack.c.b16 %v294, %v290
    %v395 = vpack.c.b16 %v295, %v291
    %v396 = vpack.c.b16 %v296, %v292
    %v397 = vpack.c.b16 %v297, %v293
    %v398 = vpack.c.b16 %v302, %v298
    %v399 = vpack.c.b16 %v303, %v299
    %v400 = vpack.c.b16 %v304, %v300
    %v401 = vpack.c.b16 %v305, %v301
    %v402 = vpack.c.b16 %v310, %v306
    %v403 = vpack.c.b16 %v311, %v307
    %v404 = vpack.c.b16 %v312, %v308
    %v405 = vpack.c.b16 %v313, %v309
    %v406 = vpack.c.b16 %v318, %v314
    %v407 = vpack.c.b16 %v319, %v315
    %v408 = vpack.c.b16 %v320, %v316
    %v409 = vpack.c.b16 %v321, %v317
    %v410 = vpack.c.b16 %v326, %v322
    %v411 = vpack.c.b16 %v327, %v323
    %v412 = vpack.c.b16 %v328, %v324
    %v413 = vpack.c.b16 %v329, %v325
    %v414 = vpack.c.b16 %v334, %v330
    %v415 = vpack.c.b16 %v335, %v331
    %v416 = vpack.c.b16 %v336, %v332
    %v417 = vpack.c.b16 %v337, %v333
    %v418 = vpack.c.b16 %v342, %v338
    %v419 = vpack.c.b16 %v343, %v339
    %v420 = vpack.c.b16 %v344, %v340
    %v421 = vpack.c.b16 %v345, %v341
    %v422 = vpack.c.b16 %v350, %v346
    %v423 = vpack.c.b16 %v351, %v347
    %v424 = vpack.c.b16 %v352, %v348
    %v425 = vpack.c.b16 %v353, %v349
    %v426 = vpack.c.b16 %v358, %v354
    %v427 = vpack.c.b16 %v359, %v355
    %v428 = vpack.c.b16 %v360, %v356
    %v429 = vpack.c.b16 %v361, %v357
    %v430 = vpack.c.b16 %v366, %v362
    %v431 = vpack.c.b16 %v367, %v363
    %v432 = vpack.c.b16 %v368, %v364
    %v433 = vpack.c.b16 %v369, %v365
    %498 = vmatprep.subr.bf16.mxu0 %v371
    %499 = vmatpush1.bf16.msra.mxu0 %v370
    %500 = vmatprep.subr.bf16.mxu0 %v375
    %501 = vmatpush1.bf16.msra.mxu0 %v374
    %502 = vmatprep.subr.bf16.mxu0 %v379
    %503 = vmatpush1.bf16.msra.mxu0 %v378
    %504 = vmatprep.subr.bf16.mxu0 %v383
    %505 = vmatpush1.bf16.msra.mxu0 %v382
    %506 = vmatprep.subr.bf16.mxu0 %v387
    %507 = vmatpush1.bf16.msra.mxu0 %v386
    %508 = vmatprep.subr.bf16.mxu0 %v391
    %509 = vmatpush1.bf16.msra.mxu0 %v390
    %510 = vmatprep.subr.bf16.mxu0 %v395
    %511 = vmatpush1.bf16.msra.mxu0 %v394
    %512 = vmatprep.subr.bf16.mxu0 %v399
    %513 = vmatpush1.bf16.msra.mxu0 %v398
    %514 = vmatprep.subr.bf16.mxu0 %v403
    %515 = vmatpush1.bf16.msra.mxu0 %v402
    %516 = vmatprep.subr.bf16.mxu0 %v407
    %517 = vmatpush1.bf16.msra.mxu0 %v406
    %518 = vmatprep.subr.bf16.mxu0 %v411
    %519 = vmatpush1.bf16.msra.mxu0 %v410
    %520 = vmatprep.subr.bf16.mxu0 %v415
    %521 = vmatpush1.bf16.msra.mxu0 %v414
    %522 = vmatprep.subr.bf16.mxu0 %v419
    %523 = vmatpush1.bf16.msra.mxu0 %v418
    %524 = vmatprep.subr.bf16.mxu0 %v423
    %525 = vmatpush1.bf16.msra.mxu0 %v422
    %526 = vmatprep.subr.bf16.mxu0 %v427
    %527 = vmatpush1.bf16.msra.mxu0 %v426
    %528 = vmatprep.subr.bf16.mxu0 %v431
    %529 = vmatpush1.bf16.msra.mxu0 %v430
    %530 = vmatprep.mubr.bf16.mxu0 %v82
    %531 = vmatmul.mubr.bf16.gmra.mrb[0].mxu0 %v81
    %v532 = vpop.f32.mrb[0].mxu0
    %v533 = vadd.f32 %v174, %v532
    %v534 = vpop.f32.mrb[0].mxu0
    %v535 = vadd.f32 %v175, %v534
    %v536 = vpop.f32.mrb[0].mxu0
    %v537 = vpop.f32.mrb[0].mxu0
    %538 = vdwg.mxu0
    %539 = vmatprep.subr.bf16.mxu0 %v373
    %540 = vmatpush1.bf16.msra.mxu0 %v372
    %541 = vmatprep.subr.bf16.mxu0 %v377
    %542 = vmatpush1.bf16.msra.mxu0 %v376
    %543 = vmatprep.subr.bf16.mxu0 %v381
    %544 = vmatpush1.bf16.msra.mxu0 %v380
    %545 = vmatprep.subr.bf16.mxu0 %v385
    %546 = vmatpush1.bf16.msra.mxu0 %v384
    %547 = vmatprep.subr.bf16.mxu0 %v389
    %548 = vmatpush1.bf16.msra.mxu0 %v388
    %549 = vmatprep.subr.bf16.mxu0 %v393
    %550 = vmatpush1.bf16.msra.mxu0 %v392
    %551 = vmatprep.subr.bf16.mxu0 %v397
    %552 = vmatpush1.bf16.msra.mxu0 %v396
    %553 = vmatprep.subr.bf16.mxu0 %v401
    %554 = vmatpush1.bf16.msra.mxu0 %v400
    %555 = vmatprep.subr.bf16.mxu0 %v405
    %556 = vmatpush1.bf16.msra.mxu0 %v404
    %557 = vmatprep.subr.bf16.mxu0 %v409
    %558 = vmatpush1.bf16.msra.mxu0 %v408
    %559 = vmatprep.subr.bf16.mxu0 %v413
    %560 = vmatpush1.bf16.msra.mxu0 %v412
    %561 = vmatprep.subr.bf16.mxu0 %v417
    %562 = vmatpush1.bf16.msra.mxu0 %v416
    %563 = vmatprep.subr.bf16.mxu0 %v421
    %564 = vmatpush1.bf16.msra.mxu0 %v420
    %565 = vmatprep.subr.bf16.mxu0 %v425
    %566 = vmatpush1.bf16.msra.mxu0 %v424
    %567 = vmatprep.subr.bf16.mxu0 %v429
    %568 = vmatpush1.bf16.msra.mxu0 %v428
    %569 = vmatprep.subr.bf16.mxu0 %v433
    %570 = vmatpush1.bf16.msra.mxu0 %v432
    %571 = vmatprep.mubr.bf16.mxu0 %v82
    %572 = vmatmul.mubr.bf16.gmra.mrb[0].mxu0 %v81
    %v573 = vpop.f32.mrb[0].mxu0
    %v574 = vadd.f32 %v176, %v573
    %v575 = vpop.f32.mrb[0].mxu0
    %v576 = vadd.f32 %v177, %v575
    %v577 = vpop.f32.mrb[0].mxu0
    %v578 = vpop.f32.mrb[0].mxu0
    %579 = vdwg.mxu0
    %v580 = vld [vmem:[%s7] sm:$0xf]
    %v582 = vlaneseq
    %v583 = vshrl.u32 %v582, 7
    %v584 = vsub.s32 0, %v583
    %v585 = vrot.slane %v580, %v584
    %v586 = vlaneseq
    %v587 = vshrl.u32 %v586, 7
    %v588 = vsub.s32 1, %v587
    %v589 = vrot.slane %v580, %v588
    %v590 = vlaneseq
    %v591 = vshrl.u32 %v590, 7
    %v592 = vsub.s32 2, %v591
    %v593 = vrot.slane %v580, %v592
    %v594 = vlaneseq
    %v595 = vshrl.u32 %v594, 7
    %v596 = vsub.s32 3, %v595
    %v597 = vrot.slane %v580, %v596
    %v602 = vadd.f32 %v533, %v585
    %v603 = vadd.f32 %v535, %v589
    %v604 = vadd.f32 %v574, %v593
    %v605 = vadd.f32 %v576, %v597
    %v606 = vmax.f32 %v602, 0.0
    %v607 = vmax.f32 %v603, 0.0
    %v608 = vmax.f32 %v604, 0.0
    %v609 = vmax.f32 %v605, 0.0
    %v610 = vpack.c.bf16 %v606, %v606
    %v611 = vpack.c.bf16 %v607, %v607
    %v612 = vpack.c.bf16 %v608, %v608
    %v613 = vpack.c.bf16 %v609, %v609
    %v614 = vld [vmem:[#allocation5] sm:$0xff]
    %v615 = vld [vmem:[#allocation5 + $0x8] sm:$0xff]
    %v616 = vld [vmem:[#allocation5 + $0x10] sm:$0xff]
    %v617 = vld [vmem:[#allocation5 + $0x18] sm:$0xff]
    %v618 = vld [vmem:[#allocation5 + $0x20] sm:$0xff]
    %v619 = vld [vmem:[#allocation5 + $0x28] sm:$0xff]
    %v620 = vld [vmem:[#allocation5 + $0x30] sm:$0xff]
    %v621 = vld [vmem:[#allocation5 + $0x38] sm:$0xff]
    %v622 = vld [vmem:[#allocation5 + $0x40] sm:$0xff]
    %v623 = vld [vmem:[#allocation5 + $0x48] sm:$0xff]
    %v624 = vld [vmem:[#allocation5 + $0x50] sm:$0xff]
    %v625 = vld [vmem:[#allocation5 + $0x58] sm:$0xff]
    %v626 = vld [vmem:[#allocation5 + $0x60] sm:$0xff]
    %v627 = vld [vmem:[#allocation5 + $0x68] sm:$0xff]
    %v628 = vld [vmem:[#allocation5 + $0x70] sm:$0xff]
    %v629 = vld [vmem:[#allocation5 + $0x78] sm:$0xff]
    %v630 = vld [vmem:[#allocation5 + $0x80] sm:$0xff]
    %v631 = vld [vmem:[#allocation5 + $0x88] sm:$0xff]
    %v632 = vld [vmem:[#allocation5 + $0x90] sm:$0xff]
    %v633 = vld [vmem:[#allocation5 + $0x98] sm:$0xff]
    %v634 = vld [vmem:[#allocation5 + $0xa0] sm:$0xff]
    %v635 = vld [vmem:[#allocation5 + $0xa8] sm:$0xff]
    %v636 = vld [vmem:[#allocation5 + $0xb0] sm:$0xff]
    %v637 = vld [vmem:[#allocation5 + $0xb8] sm:$0xff]
    %v638 = vld [vmem:[#allocation5 + $0xc0] sm:$0xff]
    %v639 = vld [vmem:[#allocation5 + $0xc8] sm:$0xff]
    %v640 = vld [vmem:[#allocation5 + $0xd0] sm:$0xff]
    %v641 = vld [vmem:[#allocation5 + $0xd8] sm:$0xff]
    %v642 = vld [vmem:[#allocation5 + $0xe0] sm:$0xff]
    %v643 = vld [vmem:[#allocation5 + $0xe8] sm:$0xff]
    %v644 = vld [vmem:[#allocation5 + $0xf0] sm:$0xff]
    %v645 = vld [vmem:[#allocation5 + $0xf8] sm:$0xff]
    %v646 = vld [vmem:[#allocation5 + $0x100] sm:$0xff]
    %v647 = vld [vmem:[#allocation5 + $0x108] sm:$0xff]
    %v648 = vld [vmem:[#allocation5 + $0x110] sm:$0xff]
    %v649 = vld [vmem:[#allocation5 + $0x118] sm:$0xff]
    %v650 = vld [vmem:[#allocation5 + $0x120] sm:$0xff]
    %v651 = vld [vmem:[#allocation5 + $0x128] sm:$0xff]
    %v652 = vld [vmem:[#allocation5 + $0x130] sm:$0xff]
    %v653 = vld [vmem:[#allocation5 + $0x138] sm:$0xff]
    %v654 = vld [vmem:[#allocation5 + $0x140] sm:$0xff]
    %v655 = vld [vmem:[#allocation5 + $0x148] sm:$0xff]
    %v656 = vld [vmem:[#allocation5 + $0x150] sm:$0xff]
    %v657 = vld [vmem:[#allocation5 + $0x158] sm:$0xff]
    %v658 = vld [vmem:[#allocation5 + $0x160] sm:$0xff]
    %v659 = vld [vmem:[#allocation5 + $0x168] sm:$0xff]
    %v660 = vld [vmem:[#allocation5 + $0x170] sm:$0xff]
    %v661 = vld [vmem:[#allocation5 + $0x178] sm:$0xff]
    %v662 = vld [vmem:[#allocation5 + $0x180] sm:$0xff]
    %v663 = vld [vmem:[#allocation5 + $0x188] sm:$0xff]
    %v664 = vld [vmem:[#allocation5 + $0x190] sm:$0xff]
    %v665 = vld [vmem:[#allocation5 + $0x198] sm:$0xff]
    %v666 = vld [vmem:[#allocation5 + $0x1a0] sm:$0xff]
    %v667 = vld [vmem:[#allocation5 + $0x1a8] sm:$0xff]
    %v668 = vld [vmem:[#allocation5 + $0x1b0] sm:$0xff]
    %v669 = vld [vmem:[#allocation5 + $0x1b8] sm:$0xff]
    %v670 = vld [vmem:[#allocation5 + $0x1c0] sm:$0xff]
    %v671 = vld [vmem:[#allocation5 + $0x1c8] sm:$0xff]
    %v672 = vld [vmem:[#allocation5 + $0x1d0] sm:$0xff]
    %v673 = vld [vmem:[#allocation5 + $0x1d8] sm:$0xff]
    %v674 = vld [vmem:[#allocation5 + $0x1e0] sm:$0xff]
    %v675 = vld [vmem:[#allocation5 + $0x1e8] sm:$0xff]
    %v676 = vld [vmem:[#allocation5 + $0x1f0] sm:$0xff]
    %v677 = vld [vmem:[#allocation5 + $0x1f8] sm:$0xff]
    %v678 = vld [vmem:[%s9] sm:$0x3]
    %v680 = vlaneseq
    %v681 = vshrl.u32 %v680, 7
    %v682 = vsub.s32 0, %v681
    %v683 = vrot.slane %v678, %v682
    %v684 = vlaneseq
    %v685 = vshrl.u32 %v684, 7
    %v686 = vsub.s32 1, %v685
    %v687 = vrot.slane %v678, %v686
    %v754 = vunpack.c.l.b16 %v614
    %v755 = vunpack.c.h.b16 %v614
    %v756 = vunpack.c.l.b16 %v615
    %v757 = vunpack.c.h.b16 %v615
    %v758 = vunpack.c.l.b16 %v616
    %v759 = vunpack.c.h.b16 %v616
    %v760 = vunpack.c.l.b16 %v617
    %v761 = vunpack.c.h.b16 %v617
    %v762 = vunpack.c.l.b16 %v618
    %v763 = vunpack.c.h.b16 %v618
    %v764 = vunpack.c.l.b16 %v619
    %v765 = vunpack.c.h.b16 %v619
    %v766 = vunpack.c.l.b16 %v620
    %v767 = vunpack.c.h.b16 %v620
    %v768 = vunpack.c.l.b16 %v621
    %v769 = vunpack.c.h.b16 %v621
    %v770 = vunpack.c.l.b16 %v622
    %v771 = vunpack.c.h.b16 %v622
    %v772 = vunpack.c.l.b16 %v623
    %v773 = vunpack.c.h.b16 %v623
    %v774 = vunpack.c.l.b16 %v624
    %v775 = vunpack.c.h.b16 %v624
    %v776 = vunpack.c.l.b16 %v625
    %v777 = vunpack.c.h.b16 %v625
    %v778 = vunpack.c.l.b16 %v626
    %v779 = vunpack.c.h.b16 %v626
    %v780 = vunpack.c.l.b16 %v627
    %v781 = vunpack.c.h.b16 %v627
    %v782 = vunpack.c.l.b16 %v628
    %v783 = vunpack.c.h.b16 %v628
    %v784 = vunpack.c.l.b16 %v629
    %v785 = vunpack.c.h.b16 %v629
    %v786 = vunpack.c.l.b16 %v630
    %v787 = vunpack.c.h.b16 %v630
    %v788 = vunpack.c.l.b16 %v631
    %v789 = vunpack.c.h.b16 %v631
    %v790 = vunpack.c.l.b16 %v632
    %v791 = vunpack.c.h.b16 %v632
    %v792 = vunpack.c.l.b16 %v633
    %v793 = vunpack.c.h.b16 %v633
    %v794 = vunpack.c.l.b16 %v634
    %v795 = vunpack.c.h.b16 %v634
    %v796 = vunpack.c.l.b16 %v635
    %v797 = vunpack.c.h.b16 %v635
    %v798 = vunpack.c.l.b16 %v636
    %v799 = vunpack.c.h.b16 %v636
    %v800 = vunpack.c.l.b16 %v637
    %v801 = vunpack.c.h.b16 %v637
    %v802 = vunpack.c.l.b16 %v638
    %v803 = vunpack.c.h.b16 %v638
    %v804 = vunpack.c.l.b16 %v639
    %v805 = vunpack.c.h.b16 %v639
    %v806 = vunpack.c.l.b16 %v640
    %v807 = vunpack.c.h.b16 %v640
    %v808 = vunpack.c.l.b16 %v641
    %v809 = vunpack.c.h.b16 %v641
    %v810 = vunpack.c.l.b16 %v642
    %v811 = vunpack.c.h.b16 %v642
    %v812 = vunpack.c.l.b16 %v643
    %v813 = vunpack.c.h.b16 %v643
    %v814 = vunpack.c.l.b16 %v644
    %v815 = vunpack.c.h.b16 %v644
    %v816 = vunpack.c.l.b16 %v645
    %v817 = vunpack.c.h.b16 %v645
    %v818 = vunpack.c.l.b16 %v646
    %v819 = vunpack.c.h.b16 %v646
    %v820 = vunpack.c.l.b16 %v647
    %v821 = vunpack.c.h.b16 %v647
    %v822 = vunpack.c.l.b16 %v648
    %v823 = vunpack.c.h.b16 %v648
    %v824 = vunpack.c.l.b16 %v649
    %v825 = vunpack.c.h.b16 %v649
    %v826 = vunpack.c.l.b16 %v650
    %v827 = vunpack.c.h.b16 %v650
    %v828 = vunpack.c.l.b16 %v651
    %v829 = vunpack.c.h.b16 %v651
    %v830 = vunpack.c.l.b16 %v652
    %v831 = vunpack.c.h.b16 %v652
    %v832 = vunpack.c.l.b16 %v653
    %v833 = vunpack.c.h.b16 %v653
    %v834 = vunpack.c.l.b16 %v654
    %v835 = vunpack.c.h.b16 %v654
    %v836 = vunpack.c.l.b16 %v655
    %v837 = vunpack.c.h.b16 %v655
    %v838 = vunpack.c.l.b16 %v656
    %v839 = vunpack.c.h.b16 %v656
    %v840 = vunpack.c.l.b16 %v657
    %v841 = vunpack.c.h.b16 %v657
    %v842 = vunpack.c.l.b16 %v658
    %v843 = vunpack.c.h.b16 %v658
    %v844 = vunpack.c.l.b16 %v659
    %v845 = vunpack.c.h.b16 %v659
    %v846 = vunpack.c.l.b16 %v660
    %v847 = vunpack.c.h.b16 %v660
    %v848 = vunpack.c.l.b16 %v661
    %v849 = vunpack.c.h.b16 %v661
    %v850 = vunpack.c.l.b16 %v662
    %v851 = vunpack.c.h.b16 %v662
    %v852 = vunpack.c.l.b16 %v663
    %v853 = vunpack.c.h.b16 %v663
    %v854 = vunpack.c.l.b16 %v664
    %v855 = vunpack.c.h.b16 %v664
    %v856 = vunpack.c.l.b16 %v665
    %v857 = vunpack.c.h.b16 %v665
    %v858 = vunpack.c.l.b16 %v666
    %v859 = vunpack.c.h.b16 %v666
    %v860 = vunpack.c.l.b16 %v667
    %v861 = vunpack.c.h.b16 %v667
    %v862 = vunpack.c.l.b16 %v668
    %v863 = vunpack.c.h.b16 %v668
    %v864 = vunpack.c.l.b16 %v669
    %v865 = vunpack.c.h.b16 %v669
    %v866 = vunpack.c.l.b16 %v670
    %v867 = vunpack.c.h.b16 %v670
    %v868 = vunpack.c.l.b16 %v671
    %v869 = vunpack.c.h.b16 %v671
    %v870 = vunpack.c.l.b16 %v672
    %v871 = vunpack.c.h.b16 %v672
    %v872 = vunpack.c.l.b16 %v673
    %v873 = vunpack.c.h.b16 %v673
    %v874 = vunpack.c.l.b16 %v674
    %v875 = vunpack.c.h.b16 %v674
    %v876 = vunpack.c.l.b16 %v675
    %v877 = vunpack.c.h.b16 %v675
    %v878 = vunpack.c.l.b16 %v676
    %v879 = vunpack.c.h.b16 %v676
    %v880 = vunpack.c.l.b16 %v677
    %v881 = vunpack.c.h.b16 %v677
    %v882 = vpack.c.b16 %v756, %v754
    %v883 = vpack.c.b16 %v757, %v755
    %v884 = vpack.c.b16 %v760, %v758
    %v885 = vpack.c.b16 %v761, %v759
    %v886 = vpack.c.b16 %v764, %v762
    %v887 = vpack.c.b16 %v765, %v763
    %v888 = vpack.c.b16 %v768, %v766
    %v889 = vpack.c.b16 %v769, %v767
    %v890 = vpack.c.b16 %v772, %v770
    %v891 = vpack.c.b16 %v773, %v771
    %v892 = vpack.c.b16 %v776, %v774
    %v893 = vpack.c.b16 %v777, %v775
    %v894 = vpack.c.b16 %v780, %v778
    %v895 = vpack.c.b16 %v781, %v779
    %v896 = vpack.c.b16 %v784, %v782
    %v897 = vpack.c.b16 %v785, %v783
    %v898 = vpack.c.b16 %v788, %v786
    %v899 = vpack.c.b16 %v789, %v787
    %v900 = vpack.c.b16 %v792, %v790
    %v901 = vpack.c.b16 %v793, %v791
    %v902 = vpack.c.b16 %v796, %v794
    %v903 = vpack.c.b16 %v797, %v795
    %v904 = vpack.c.b16 %v800, %v798
    %v905 = vpack.c.b16 %v801, %v799
    %v906 = vpack.c.b16 %v804, %v802
    %v907 = vpack.c.b16 %v805, %v803
    %v908 = vpack.c.b16 %v808, %v806
    %v909 = vpack.c.b16 %v809, %v807
    %v910 = vpack.c.b16 %v812, %v810
    %v911 = vpack.c.b16 %v813, %v811
    %v912 = vpack.c.b16 %v816, %v814
    %v913 = vpack.c.b16 %v817, %v815
    %v914 = vpack.c.b16 %v820, %v818
    %v915 = vpack.c.b16 %v821, %v819
    %v916 = vpack.c.b16 %v824, %v822
    %v917 = vpack.c.b16 %v825, %v823
    %v918 = vpack.c.b16 %v828, %v826
    %v919 = vpack.c.b16 %v829, %v827
    %v920 = vpack.c.b16 %v832, %v830
    %v921 = vpack.c.b16 %v833, %v831
    %v922 = vpack.c.b16 %v836, %v834
    %v923 = vpack.c.b16 %v837, %v835
    %v924 = vpack.c.b16 %v840, %v838
    %v925 = vpack.c.b16 %v841, %v839
    %v926 = vpack.c.b16 %v844, %v842
    %v927 = vpack.c.b16 %v845, %v843
    %v928 = vpack.c.b16 %v848, %v846
    %v929 = vpack.c.b16 %v849, %v847
    %v930 = vpack.c.b16 %v852, %v850
    %v931 = vpack.c.b16 %v853, %v851
    %v932 = vpack.c.b16 %v856, %v854
    %v933 = vpack.c.b16 %v857, %v855
    %v934 = vpack.c.b16 %v860, %v858
    %v935 = vpack.c.b16 %v861, %v859
    %v936 = vpack.c.b16 %v864, %v862
    %v937 = vpack.c.b16 %v865, %v863
    %v938 = vpack.c.b16 %v868, %v866
    %v939 = vpack.c.b16 %v869, %v867
    %v940 = vpack.c.b16 %v872, %v870
    %v941 = vpack.c.b16 %v873, %v871
    %v942 = vpack.c.b16 %v876, %v874
    %v943 = vpack.c.b16 %v877, %v875
    %v944 = vpack.c.b16 %v880, %v878
    %v945 = vpack.c.b16 %v881, %v879
    %1010 = vmatprep.subr.bf16.mxu0 %v883
    %1011 = vmatpush1.bf16.msra.mxu0 %v882
    %1012 = vmatprep.subr.bf16.mxu0 %v885
    %1013 = vmatpush1.bf16.msra.mxu0 %v884
    %1014 = vmatprep.subr.bf16.mxu0 %v887
    %1015 = vmatpush1.bf16.msra.mxu0 %v886
    %1016 = vmatprep.subr.bf16.mxu0 %v889
    %1017 = vmatpush1.bf16.msra.mxu0 %v888
    %1018 = vmatprep.subr.bf16.mxu0 %v891
    %1019 = vmatpush1.bf16.msra.mxu0 %v890
    %1020 = vmatprep.subr.bf16.mxu0 %v893
    %1021 = vmatpush1.bf16.msra.mxu0 %v892
    %1022 = vmatprep.subr.bf16.mxu0 %v895
    %1023 = vmatpush1.bf16.msra.mxu0 %v894
    %1024 = vmatprep.subr.bf16.mxu0 %v897
    %1025 = vmatpush1.bf16.msra.mxu0 %v896
    %1026 = vmatprep.subr.bf16.mxu0 %v899
    %1027 = vmatpush1.bf16.msra.mxu0 %v898
    %1028 = vmatprep.subr.bf16.mxu0 %v901
    %1029 = vmatpush1.bf16.msra.mxu0 %v900
    %1030 = vmatprep.subr.bf16.mxu0 %v903
    %1031 = vmatpush1.bf16.msra.mxu0 %v902
    %1032 = vmatprep.subr.bf16.mxu0 %v905
    %1033 = vmatpush1.bf16.msra.mxu0 %v904
    %1034 = vmatprep.subr.bf16.mxu0 %v907
    %1035 = vmatpush1.bf16.msra.mxu0 %v906
    %1036 = vmatprep.subr.bf16.mxu0 %v909
    %1037 = vmatpush1.bf16.msra.mxu0 %v908
    %1038 = vmatprep.subr.bf16.mxu0 %v911
    %1039 = vmatpush1.bf16.msra.mxu0 %v910
    %1040 = vmatprep.subr.bf16.mxu0 %v913
    %1041 = vmatpush1.bf16.msra.mxu0 %v912
    %1042 = vmatprep.mubr.bf16.mxu0 %v611
    %1043 = vmatmul.mubr.bf16.gmra.mrb[0].mxu0 %v610
    %v1044 = vpop.f32.mrb[0].mxu0
    %v1045 = vadd.f32 %v683, %v1044
    %v1046 = vpop.f32.mrb[0].mxu0
    %v1047 = vadd.f32 %v687, %v1046
    %v1048 = vpop.f32.mrb[0].mxu0
    %v1049 = vpop.f32.mrb[0].mxu0
    %1050 = vdwg.mxu0
    %1051 = vmatprep.subr.bf16.mxu0 %v915
    %1052 = vmatpush1.bf16.msra.mxu0 %v914
    %1053 = vmatprep.subr.bf16.mxu0 %v917
    %1054 = vmatpush1.bf16.msra.mxu0 %v916
    %1055 = vmatprep.subr.bf16.mxu0 %v919
    %1056 = vmatpush1.bf16.msra.mxu0 %v918
    %1057 = vmatprep.subr.bf16.mxu0 %v921
    %1058 = vmatpush1.bf16.msra.mxu0 %v920
    %1059 = vmatprep.subr.bf16.mxu0 %v923
    %1060 = vmatpush1.bf16.msra.mxu0 %v922
    %1061 = vmatprep.subr.bf16.mxu0 %v925
    %1062 = vmatpush1.bf16.msra.mxu0 %v924
    %1063 = vmatprep.subr.bf16.mxu0 %v927
    %1064 = vmatpush1.bf16.msra.mxu0 %v926
    %1065 = vmatprep.subr.bf16.mxu0 %v929
    %1066 = vmatpush1.bf16.msra.mxu0 %v928
    %1067 = vmatprep.subr.bf16.mxu0 %v931
    %1068 = vmatpush1.bf16.msra.mxu0 %v930
    %1069 = vmatprep.subr.bf16.mxu0 %v933
    %1070 = vmatpush1.bf16.msra.mxu0 %v932
    %1071 = vmatprep.subr.bf16.mxu0 %v935
    %1072 = vmatpush1.bf16.msra.mxu0 %v934
    %1073 = vmatprep.subr.bf16.mxu0 %v937
    %1074 = vmatpush1.bf16.msra.mxu0 %v936
    %1075 = vmatprep.subr.bf16.mxu0 %v939
    %1076 = vmatpush1.bf16.msra.mxu0 %v938
    %1077 = vmatprep.subr.bf16.mxu0 %v941
    %1078 = vmatpush1.bf16.msra.mxu0 %v940
    %1079 = vmatprep.subr.bf16.mxu0 %v943
    %1080 = vmatpush1.bf16.msra.mxu0 %v942
    %1081 = vmatprep.subr.bf16.mxu0 %v945
    %1082 = vmatpush1.bf16.msra.mxu0 %v944
    %1083 = vmatprep.mubr.bf16.mxu0 %v613
    %1084 = vmatmul.mubr.bf16.gmra.mrb[0].mxu0 %v612
    %v1085 = vpop.f32.mrb[0].mxu0
    %v1086 = vadd.f32 %v1045, %v1085
    %v1087 = vpop.f32.mrb[0].mxu0
    %v1088 = vadd.f32 %v1047, %v1087
    %v1089 = vpop.f32.mrb[0].mxu0
    %v1090 = vpop.f32.mrb[0].mxu0
    %1091 = vdwg.mxu0
    %v1092 = vmax.f32 %v1086, 0.0
    %v1093 = vmax.f32 %v1088, 0.0
    %v1094 = vpack.c.bf16 %v1092, %v1092
    %v1095 = vpack.c.bf16 %v1093, %v1093
    %v1096 = vld [vmem:[%s10] sm:$0xf]
    %v1097 = vld [vmem:[%s10 + $0x4] sm:$0xf]
    %v1098 = vld [vmem:[%s10 + $0x8] sm:$0xf]
    %v1099 = vld [vmem:[%s10 + $0xc] sm:$0xf]
    %v1100 = vld [vmem:[%s10 + $0x10] sm:$0xf]
    %v1101 = vld [vmem:[%s10 + $0x14] sm:$0xf]
    %v1102 = vld [vmem:[%s10 + $0x18] sm:$0xf]
    %v1103 = vld [vmem:[%s10 + $0x1c] sm:$0xf]
    %v1104 = vld [vmem:[%s10 + $0x20] sm:$0xf]
    %v1105 = vld [vmem:[%s10 + $0x24] sm:$0xf]
    %v1106 = vld [vmem:[%s10 + $0x28] sm:$0xf]
    %v1107 = vld [vmem:[%s10 + $0x2c] sm:$0xf]
    %v1108 = vld [vmem:[%s10 + $0x30] sm:$0xf]
    %v1109 = vld [vmem:[%s10 + $0x34] sm:$0xf]
    %v1110 = vld [vmem:[%s10 + $0x38] sm:$0xf]
    %v1111 = vld [vmem:[%s10 + $0x3c] sm:$0xf]
    %v1112 = vld [vmem:[%s10 + $0x40] sm:$0xf]
    %v1113 = vld [vmem:[%s10 + $0x44] sm:$0xf]
    %v1114 = vld [vmem:[%s10 + $0x48] sm:$0xf]
    %v1115 = vld [vmem:[%s10 + $0x4c] sm:$0xf]
    %v1116 = vld [vmem:[%s10 + $0x50] sm:$0xf]
    %v1117 = vld [vmem:[%s10 + $0x54] sm:$0xf]
    %v1118 = vld [vmem:[%s10 + $0x58] sm:$0xf]
    %v1119 = vld [vmem:[%s10 + $0x5c] sm:$0xf]
    %v1120 = vld [vmem:[%s10 + $0x60] sm:$0xf]
    %v1121 = vld [vmem:[%s10 + $0x64] sm:$0xf]
    %v1122 = vld [vmem:[%s10 + $0x68] sm:$0xf]
    %v1123 = vld [vmem:[%s10 + $0x6c] sm:$0xf]
    %v1124 = vld [vmem:[%s10 + $0x70] sm:$0xf]
    %v1125 = vld [vmem:[%s10 + $0x74] sm:$0xf]
    %v1126 = vld [vmem:[%s10 + $0x78] sm:$0xf]
    %v1127 = vld [vmem:[%s10 + $0x7c] sm:$0xf]
    %v1128 = vld [vmem:[%s11] sm:$0x1]
    %v1130 = vlaneseq
    %v1131 = vshrl.u32 %v1130, 7
    %v1132 = vsub.s32 0, %v1131
    %v1133 = vrot.slane %v1128, %v1132
    %v1167 = vunpack.c.l.b16 %v1096
    %v1168 = vunpack.c.l.b16 %v1097
    %v1169 = vunpack.c.l.b16 %v1098
    %v1170 = vunpack.c.l.b16 %v1099
    %v1171 = vunpack.c.l.b16 %v1100
    %v1172 = vunpack.c.l.b16 %v1101
    %v1173 = vunpack.c.l.b16 %v1102
    %v1174 = vunpack.c.l.b16 %v1103
    %v1175 = vunpack.c.l.b16 %v1104
    %v1176 = vunpack.c.l.b16 %v1105
    %v1177 = vunpack.c.l.b16 %v1106
    %v1178 = vunpack.c.l.b16 %v1107
    %v1179 = vunpack.c.l.b16 %v1108
    %v1180 = vunpack.c.l.b16 %v1109
    %v1181 = vunpack.c.l.b16 %v1110
    %v1182 = vunpack.c.l.b16 %v1111
    %v1183 = vunpack.c.l.b16 %v1112
    %v1184 = vunpack.c.l.b16 %v1113
    %v1185 = vunpack.c.l.b16 %v1114
    %v1186 = vunpack.c.l.b16 %v1115
    %v1187 = vunpack.c.l.b16 %v1116
    %v1188 = vunpack.c.l.b16 %v1117
    %v1189 = vunpack.c.l.b16 %v1118
    %v1190 = vunpack.c.l.b16 %v1119
    %v1191 = vunpack.c.l.b16 %v1120
    %v1192 = vunpack.c.l.b16 %v1121
    %v1193 = vunpack.c.l.b16 %v1122
    %v1194 = vunpack.c.l.b16 %v1123
    %v1195 = vunpack.c.l.b16 %v1124
    %v1196 = vunpack.c.l.b16 %v1125
    %v1197 = vunpack.c.l.b16 %v1126
    %v1198 = vunpack.c.l.b16 %v1127
    %v1199 = vpack.c.b16 %v1168, %v1167
    %v1200 = vpack.c.b16 %v1170, %v1169
    %v1201 = vpack.c.b16 %v1172, %v1171
    %v1202 = vpack.c.b16 %v1174, %v1173
    %v1203 = vpack.c.b16 %v1176, %v1175
    %v1204 = vpack.c.b16 %v1178, %v1177
    %v1205 = vpack.c.b16 %v1180, %v1179
    %v1206 = vpack.c.b16 %v1182, %v1181
    %v1207 = vpack.c.b16 %v1184, %v1183
    %v1208 = vpack.c.b16 %v1186, %v1185
    %v1209 = vpack.c.b16 %v1188, %v1187
    %v1210 = vpack.c.b16 %v1190, %v1189
    %v1211 = vpack.c.b16 %v1192, %v1191
    %v1212 = vpack.c.b16 %v1194, %v1193
    %v1213 = vpack.c.b16 %v1196, %v1195
    %v1214 = vpack.c.b16 %v1198, %v1197
    %1231 = vmatprep.subr.bf16.mxu0 0
    %1232 = vmatpush1.bf16.msra.mxu0 %v1199
    %1233 = vmatprep.subr.bf16.mxu0 0
    %1234 = vmatpush1.bf16.msra.mxu0 %v1200
    %1235 = vmatprep.subr.bf16.mxu0 0
    %1236 = vmatpush1.bf16.msra.mxu0 %v1201
    %1237 = vmatprep.subr.bf16.mxu0 0
    %1238 = vmatpush1.bf16.msra.mxu0 %v1202
    %1239 = vmatprep.subr.bf16.mxu0 0
    %1240 = vmatpush1.bf16.msra.mxu0 %v1203
    %1241 = vmatprep.subr.bf16.mxu0 0
    %1242 = vmatpush1.bf16.msra.mxu0 %v1204
    %1243 = vmatprep.subr.bf16.mxu0 0
    %1244 = vmatpush1.bf16.msra.mxu0 %v1205
    %1245 = vmatprep.subr.bf16.mxu0 0
    %1246 = vmatpush1.bf16.msra.mxu0 %v1206
    %1247 = vmatprep.subr.bf16.mxu0 0
    %1248 = vmatpush1.bf16.msra.mxu0 %v1207
    %1249 = vmatprep.subr.bf16.mxu0 0
    %1250 = vmatpush1.bf16.msra.mxu0 %v1208
    %1251 = vmatprep.subr.bf16.mxu0 0
    %1252 = vmatpush1.bf16.msra.mxu0 %v1209
    %1253 = vmatprep.subr.bf16.mxu0 0
    %1254 = vmatpush1.bf16.msra.mxu0 %v1210
    %1255 = vmatprep.subr.bf16.mxu0 0
    %1256 = vmatpush1.bf16.msra.mxu0 %v1211
    %1257 = vmatprep.subr.bf16.mxu0 0
    %1258 = vmatpush1.bf16.msra.mxu0 %v1212
    %1259 = vmatprep.subr.bf16.mxu0 0
    %1260 = vmatpush1.bf16.msra.mxu0 %v1213
    %1261 = vmatprep.subr.bf16.mxu0 0
    %1262 = vmatpush1.bf16.msra.mxu0 %v1214
    %1263 = vmatprep.mubr.bf16.mxu0 %v1095
    %1264 = vmatmul.mubr.bf16.gmra.mrb[0].mxu0 %v1094
    %v1265 = vpop.f32.mrb[0].mxu0
    %v1266 = vadd.f32 %v1133, %v1265
    %v1267 = vpop.f32.mrb[0].mxu0
    %v1268 = vpop.f32.mrb[0].mxu0
    %v1269 = vpop.f32.mrb[0].mxu0
    %1270 = vdwg.mxu0
    %v1271 = vmax.f32 %v1266, 0.0
    %v1272 = vld [vmem:[%s3] sm:$0xf]
    %v1273 = vld [vmem:[%s4] sm:$0xf]
    %v1274 = vmul.bf16 %v1272, %v1273
    %v1275 = vpack.c.bf16 %v80, %v80
    %1277 = vset.pattern.permute.xlu0 0
    %1278 = vperm.xlu0 %1277, %v1275
    %v1279 = vpop.permute.xlu0 %1278
    %v1281 = vmul.bf16 %v1274, %v1279
    %v1282 = vld [vmem:[%s12] sm:$0xf]
    %v1283 = vld [vmem:[%s12 + $0x4] sm:$0xf]
    %v1284 = vld [vmem:[%s12 + $0x8] sm:$0xf]
    %v1285 = vld [vmem:[%s12 + $0xc] sm:$0xf]
    %v1286 = vpack.c.bf16 %v1271, %v1271
    %v1287 = vld [vmem:[%s13] sm:$0xf]
    %v1288 = vld [vmem:[%s13 + $0x4] sm:$0xf]
    %v1289 = vld [vmem:[%s13 + $0x8] sm:$0xf]
    %v1290 = vld [vmem:[%s13 + $0xc] sm:$0xf]
    %v1295 = vunpack.c.l.b16 %v1287
    %v1296 = vunpack.c.l.b16 %v1288
    %v1297 = vunpack.c.l.b16 %v1289
    %v1298 = vunpack.c.l.b16 %v1290
    %v1299 = vpack.c.b16 %v1296, %v1295
    %v1300 = vpack.c.b16 %v1298, %v1297
    %vm1303 = vcmask 261120
    %v1305 = vsel %vm1303, %v1286, 0
    %1307 = vmatprep.subr.bf16.mxu0 0
    %1308 = vmatpush1.bf16.msra.mxu0 %v1299
    %1309 = vmatprep.subr.bf16.mxu0 0
    %1310 = vmatpush1.bf16.msra.mxu0 %v1300
    %1311 = vmatprep.subr.bf16.mxu0 0
    %1312 = vmatpush1.bf16.msra.mxu0 0
    %1313 = vmatprep.subr.bf16.mxu0 0
    %1314 = vmatpush1.bf16.msra.mxu0 0
    %1315 = vmatprep.subr.bf16.mxu0 0
    %1316 = vmatpush1.bf16.msra.mxu0 0
    %1317 = vmatprep.subr.bf16.mxu0 0
    %1318 = vmatpush1.bf16.msra.mxu0 0
    %1319 = vmatprep.subr.bf16.mxu0 0
    %1320 = vmatpush1.bf16.msra.mxu0 0
    %1321 = vmatprep.subr.bf16.mxu0 0
    %1322 = vmatpush1.bf16.msra.mxu0 0
    %1323 = vmatprep.subr.bf16.mxu0 0
    %1324 = vmatpush1.bf16.msra.mxu0 0
    %1325 = vmatprep.subr.bf16.mxu0 0
    %1326 = vmatpush1.bf16.msra.mxu0 0
    %1327 = vmatprep.subr.bf16.mxu0 0
    %1328 = vmatpush1.bf16.msra.mxu0 0
    %1329 = vmatprep.subr.bf16.mxu0 0
    %1330 = vmatpush1.bf16.msra.mxu0 0
    %1331 = vmatprep.subr.bf16.mxu0 0
    %1332 = vmatpush1.bf16.msra.mxu0 0
    %1333 = vmatprep.subr.bf16.mxu0 0
    %1334 = vmatpush1.bf16.msra.mxu0 0
    %1335 = vmatprep.subr.bf16.mxu0 0
    %1336 = vmatpush1.bf16.msra.mxu0 0
    %1337 = vmatprep.subr.bf16.mxu0 0
    %1338 = vmatpush1.bf16.msra.mxu0 0
    %1339 = vmatprep.mubr.bf16.mxu0 0
    %1340 = vmatmul.mubr.bf16.gmra.mrb[0].mxu0 %v1305
    %v1341 = vpop.f32.mrb[0].mxu0
    %v1342 = vadd.f32 0.0, %v1341
    %v1343 = vpop.f32.mrb[0].mxu0
    %v1344 = vpop.f32.mrb[0].mxu0
    %v1345 = vpop.f32.mrb[0].mxu0
    %1346 = vdwg.mxu0
    %v1351 = vunpack.c.l.b16 %v1282
    %v1352 = vunpack.c.l.b16 %v1283
    %v1353 = vunpack.c.l.b16 %v1284
    %v1354 = vunpack.c.l.b16 %v1285
    %v1355 = vpack.c.b16 %v1352, %v1351
    %v1356 = vpack.c.b16 %v1354, %v1353
    %v1360 = vsel %vm1303, %v1281, 0
    %1362 = vmatprep.subr.bf16.mxu0 0
    %1363 = vmatpush1.bf16.msra.mxu0 %v1355
    %1364 = vmatprep.subr.bf16.mxu0 0
    %1365 = vmatpush1.bf16.msra.mxu0 %v1356
    %1366 = vmatprep.subr.bf16.mxu0 0
    %1367 = vmatpush1.bf16.msra.mxu0 0
    %1368 = vmatprep.subr.bf16.mxu0 0
    %1369 = vmatpush1.bf16.msra.mxu0 0
    %1370 = vmatprep.subr.bf16.mxu0 0
    %1371 = vmatpush1.bf16.msra.mxu0 0
    %1372 = vmatprep.subr.bf16.mxu0 0
    %1373 = vmatpush1.bf16.msra.mxu0 0
    %1374 = vmatprep.subr.bf16.mxu0 0
    %1375 = vmatpush1.bf16.msra.mxu0 0
    %1376 = vmatprep.subr.bf16.mxu0 0
    %1377 = vmatpush1.bf16.msra.mxu0 0
    %1378 = vmatprep.subr.bf16.mxu0 0
    %1379 = vmatpush1.bf16.msra.mxu0 0
    %1380 = vmatprep.subr.bf16.mxu0 0
    %1381 = vmatpush1.bf16.msra.mxu0 0
    %1382 = vmatprep.subr.bf16.mxu0 0
    %1383 = vmatpush1.bf16.msra.mxu0 0
    %1384 = vmatprep.subr.bf16.mxu0 0
    %1385 = vmatpush1.bf16.msra.mxu0 0
    %1386 = vmatprep.subr.bf16.mxu0 0
    %1387 = vmatpush1.bf16.msra.mxu0 0
    %1388 = vmatprep.subr.bf16.mxu0 0
    %1389 = vmatpush1.bf16.msra.mxu0 0
    %1390 = vmatprep.subr.bf16.mxu0 0
    %1391 = vmatpush1.bf16.msra.mxu0 0
    %1392 = vmatprep.subr.bf16.mxu0 0
    %1393 = vmatpush1.bf16.msra.mxu0 0
    %1394 = vmatprep.mubr.bf16.mxu0 0
    %1395 = vmatmul.mubr.bf16.gmra.mrb[0].mxu0 %v1360
    %v1396 = vpop.f32.mrb[0].mxu0
    %v1397 = vadd.f32 %v1342, %v1396
    %v1398 = vpop.f32.mrb[0].mxu0
    %v1399 = vpop.f32.mrb[0].mxu0
    %v1400 = vpop.f32.mrb[0].mxu0
    %1401 = vdwg.mxu0
    %v1402 = vld [vmem:[%s14] sm:$0x1]
    %v1404 = vlaneseq
    %v1405 = vshrl.u32 %v1404, 7
    %v1406 = vsub.s32 0, %v1405
    %v1407 = vrot.slane %v1402, %v1406
    %v1409 = vadd.f32 %v1397, %v1407
    %vm1410 = vcmask 64512
    %1411 = vst.msk [vmem:[#allocation7] sm:$0xff] %vm1410, %v1409
    // Predicated region
    $region70: #{tpu_custom_call.1} parent=1 // pred_check
      _
    $region71: #{tpu_custom_call.1} parent=1 // pred_check_branch
      %1413 = sbr.rel (0) target = $region73
    $region72: #{tpu_custom_call.1} parent=1 // pred_region
      %s1415 = ssub.s32 128, 128
      %1416 = vsyncadd [#allocation4], %s1415
      %s1418 = sshll.u32 [#allocation7], 4
      %s1419 = int_to_ptr.vmem [resolvable:$true] %s1418
      %1421 = dma.vmem_to_hbm [thread:$0]  %s1419, 128, %s15, [#allocation4]
    $region73: #{tpu_custom_call.1} parent=1 // pred_fallthru
      _
    // Predicated region
    $region74: #{tpu_custom_call.1} parent=1 // pred_check
      _
    $region75: #{tpu_custom_call.1} parent=1 // pred_check_branch
      %1423 = sbr.rel (0) target = $region77
    $region76: #{tpu_custom_call.1} parent=1 // pred_region
      %1424 = dma.done [#allocation4], 128
    $region77: #{tpu_custom_call.1} parent=1 // pred_fallthru
      _
    %1425 = vsyncpa [#allocation3], 1
    %1426 = vsyncpa [#allocation6], 1
    %1427 = vsyncpa [#allocation4], 1

</llo_original>
